<compile_context>
chip_gen: v7x
topology: tpu7x:2x2x1
jax: 0.10.0
libtpu: 0.0.40
codegen_flags: <defaults>
</compile_context>

<pallas_src>
import jax
import jax.numpy as jnp
from jax import lax
from jax.experimental import pallas as pl
from jax.experimental.pallas import tpu as pltpu

# ----------------------------- config (small, synthetic) ----------------------
B, S = 2, 8             # batch, sequence length
BS = B * S              # folded batch*seq rows (16)
H, NH, HD = 128, 4, 32  # hidden, num heads, head dim
I = 512                 # intermediate (FFN) size
L = 2                   # number of encoder layers
VOCAB, MAXPOS, NTYPE = 64, 32, 2
C = 4                   # class_num (classifier output dim)
CPAD = 128              # classifier output padded to a lane-dense width
IPAD = I                # padded width for the packed per-layer vector slab
LN_EPS = 1e-12          # BERT layer_norm_eps


# ----------------------------- in-kernel helpers -------------------------------
def _layernorm(x, g, b):
    mu = jnp.mean(x, axis=-1, keepdims=True)
    var = jnp.mean(jnp.square(x - mu), axis=-1, keepdims=True)
    return (x - mu) * lax.rsqrt(var + LN_EPS) * g + b


def _gelu(x):
    # TODO(synk): HF BertIntermediate default is exact erf GELU; tanh approx used
    # here (EUP tanh), tiny numeric delta vs. the PyTorch reference.
    c = 0.7978845608028654  # sqrt(2/pi)
    return 0.5 * x * (1.0 + jnp.tanh(c * (x + 0.044715 * x * x * x)))


# ----------------------------- fused forward kernel ----------------------------
def fused_bert_kernel(emb_ref, mask_ref, gvec_ref, pw_ref, cw_ref,
                      wqkv_ref, wo_ref, wi_ref, wo2_ref, lvec_ref,
                      out_ref, x_sc):
    # NOTE: correctness of the x_sc layer carry relies on the single grid axis
    # (L) being iterated sequentially ("arbitrary"); do not mark it parallel.
    l = pl.program_id(0)

    # ---- embeddings LayerNorm (first layer step only) ----
    @pl.when(l == 0)
    def _():
        x_sc[...] = _layernorm(emb_ref[...], gvec_ref[0:1, :], gvec_ref[1:2, :])

    x = x_sc[...]                       # (BS, H) f32, carried across layers
    xb = x.astype(jnp.bfloat16)

    lv = lvec_ref[0]                    # (8, IPAD) packed per-layer vectors
    bqkv = lv[0:1, :3 * H]              # (1, 3H)  (q part pre-scaled by 1/sqrt(HD))
    bo = lv[1:2, :H]
    g1 = lv[2:3, :H]
    b1 = lv[3:4, :H]
    bi = lv[4:5, :I]
    bo2 = lv[5:6, :H]
    g2 = lv[6:7, :H]
    b2 = lv[7:8, :H]

    # ---- fused, lane-dense QKV projection: one (BS,H)@(H,3H) MXU pass ----
    qkv = jnp.dot(xb, wqkv_ref[0], preferred_element_type=jnp.float32) + bqkv  # (BS, 3H)
    q = qkv[:, :H]
    k = qkv[:, H:2 * H]
    v = qkv[:, 2 * H:]

    # head-batched views (NH, BS, HD) for the (inherently per-head) score matmuls
    qh = jnp.stack([q[:, n * HD:(n + 1) * HD] for n in range(NH)]).astype(jnp.bfloat16)
    kh = jnp.stack([k[:, n * HD:(n + 1) * HD] for n in range(NH)]).astype(jnp.bfloat16)
    vh = jnp.stack([v[:, n * HD:(n + 1) * HD] for n in range(NH)]).astype(jnp.bfloat16)

    # scores over the folded (BS) axis; mask_ref carries padding mask + block-diag
    # -1e9 that zeroes cross-batch attention, so folding B is exact.
    s = jnp.einsum('nqd,nkd->nqk', qh, kh,
                   preferred_element_type=jnp.float32)                # (NH, BS, BS)
    s = s + mask_ref[...][None]
    s = s - jnp.max(s, axis=-1, keepdims=True)
    p = jnp.exp(s)
    p = p * pl.reciprocal(jnp.sum(p, axis=-1, keepdims=True), approx=True)

    ctx = jnp.einsum('nqk,nkd->nqd', p.astype(jnp.bfloat16), vh,
                     preferred_element_type=jnp.float32)              # (NH, BS, HD)
    # concat heads along lanes -> single lane-dense output projection
    ctx_cat = jnp.concatenate([ctx[n] for n in range(NH)], axis=-1).astype(jnp.bfloat16)
    attn = jnp.dot(ctx_cat, wo_ref[0],
                   preferred_element_type=jnp.float32) + bo           # (BS, H)

    h1 = _layernorm(attn + x, g1, b1)

    # ---- FFN ----
    inter = _gelu(jnp.dot(h1.astype(jnp.bfloat16), wi_ref[0],
                          preferred_element_type=jnp.float32) + bi)   # (BS, I)
    ffn = jnp.dot(inter.astype(jnp.bfloat16), wo2_ref[0],
                  preferred_element_type=jnp.float32) + bo2           # (BS, H)
    x_new = _layernorm(ffn + h1, g2, b2)
    x_sc[...] = x_new

    # ---- pooler ([CLS]) + classifier on the last layer step ----
    @pl.when(l == pl.num_programs(0) - 1)
    def _():
        cls = x_new.reshape(B, S, H)[:, 0, :]                          # (B, H)
        pooled = jnp.tanh(jnp.dot(cls.astype(jnp.bfloat16), pw_ref[...],
                                  preferred_element_type=jnp.float32)
                          + gvec_ref[2:3, :])
        # TODO(synk): dropout is identity at inference (eval mode).
        logits = jnp.dot(pooled.astype(jnp.bfloat16), cw_ref[...],
                         preferred_element_type=jnp.float32) + gvec_ref[3:4, :]
        out_ref[...] = logits                                          # (B, CPAD)


# ----------------------------- params ------------------------------------------
def init_params(key):
    keys = iter(jax.random.split(key, 8 + 8 * L))
    nrm = lambda shape: jax.random.normal(next(keys), shape, jnp.float32) * 0.02
    params = {
        'word_emb': nrm((VOCAB, H)),
        'pos_emb': nrm((MAXPOS, H)),
        'type_emb': nrm((NTYPE, H)),
        'emb_g': jnp.ones((1, H), jnp.float32), 'emb_b': jnp.zeros((1, H), jnp.float32),
        'pooler_w': nrm((H, H)), 'pooler_b': jnp.zeros((1, H), jnp.float32),
        'cls_w': nrm((H, C)), 'cls_b': jnp.zeros((1, C), jnp.float32),
        'layers': [],
    }
    for _ in range(L):
        params['layers'].append(dict(
            wq=nrm((H, H)), bq=jnp.zeros((1, H), jnp.float32),
            wk=nrm((H, H)), bk=jnp.zeros((1, H), jnp.float32),
            wv=nrm((H, H)), bv=jnp.zeros((1, H), jnp.float32),
            wo=nrm((H, H)), bo=jnp.zeros((1, H), jnp.float32),
            g1=jnp.ones((1, H), jnp.float32), b1=jnp.zeros((1, H), jnp.float32),
            wi=nrm((H, I)), bi=jnp.zeros((1, I), jnp.float32),
            wo2=nrm((I, H)), bo2=jnp.zeros((1, H), jnp.float32),
            g2=jnp.ones((1, H), jnp.float32), b2=jnp.zeros((1, H), jnp.float32),
        ))
    return params


def prepare_fused_params(p):
    """Stack per-layer weights over L, fuse QKV (scale folded into Q), pack small
    vectors into single slabs, pad classifier, cast matmul weights to bf16."""
    assert CPAD == H, "packed global-vector slab assumes classifier pad width == H"
    bf = lambda a: a.astype(jnp.bfloat16)
    stk = lambda name: jnp.stack([lp[name] for lp in p['layers']])       # (L, ...)
    scale = jnp.float32(1.0 / (HD ** 0.5))

    # fused QKV weight (L, H, 3H) with 1/sqrt(HD) folded into the Q block
    wqkv = jnp.concatenate([stk('wq') * scale, stk('wk'), stk('wv')], axis=-1)
    bqkv = jnp.concatenate([stk('bq') * scale, stk('bk'), stk('bv')], axis=-1)  # (L,1,3H)

    def pad_last(a, n):
        return jnp.pad(a, ((0, 0), (0, 0), (0, n - a.shape[-1])))

    # packed per-layer small vectors: (L, 8, IPAD)
    lvec = jnp.concatenate([
        pad_last(bqkv, IPAD),
        pad_last(stk('bo'), IPAD),
        pad_last(stk('g1'), IPAD),
        pad_last(stk('b1'), IPAD),
        pad_last(stk('bi'), IPAD),
        pad_last(stk('bo2'), IPAD),
        pad_last(stk('g2'), IPAD),
        pad_last(stk('b2'), IPAD),
    ], axis=1)

    # packed fixed small vectors: (4, H) = [emb_g, emb_b, pooler_b, cls_b_padded]
    gvec = jnp.concatenate([
        p['emb_g'], p['emb_b'], p['pooler_b'],
        jnp.zeros((1, CPAD), jnp.float32).at[:, :C].set(p['cls_b']),
    ], axis=0)

    return {
        'word_emb': p['word_emb'], 'pos_emb': p['pos_emb'], 'type_emb': p['type_emb'],
        'gvec': gvec,
        'wqkv': bf(wqkv),
        'wo': bf(stk('wo')),
        'wi': bf(stk('wi')),
        'wo2': bf(stk('wo2')),
        'lvec': lvec,
        'pooler_w': bf(p['pooler_w']),
        'cls_w_pad': bf(jnp.zeros((H, CPAD), jnp.float32).at[:, :C].set(p['cls_w'])),
    }


# ----------------------------- forward (one pallas_call) ------------------------
@jax.jit
def text_bert_forward(fp, input_ids, token_type_ids, attn_masks):
    """Equivalent of TextBERT.forward(x, token_type_id, attn_masks) -> logits (B, C)."""
    # embedding table gathers are plain-JAX glue (XLA gather); everything else in-kernel
    we = fp['word_emb'][input_ids]                                   # (B, S, H)
    pe = fp['pos_emb'][:S][None]                                     # (1, S, H)
    te = fp['type_emb'][token_type_ids]                              # (B, S, H)
    emb = (we + pe + te).reshape(BS, H)                              # (B*S, H)

    # combined additive mask over the folded (B*S) key axis:
    #   same-batch padded keys -> -10000 (HF extended mask), cross-batch -> -1e9
    key_pad = ((1.0 - attn_masks.astype(jnp.float32)) * -10000.0).reshape(1, BS)
    bid = jnp.repeat(jnp.arange(B), S)
    same = bid[:, None] == bid[None, :]
    mask2d = jnp.where(same, key_pad, jnp.float32(-1e9))             # (BS, BS)

    def fixed(shape):
        nd = len(shape)
        return pl.BlockSpec(shape, lambda l, nd=nd: (0,) * nd)

    def per_layer(shape):
        nd = len(shape)
        return pl.BlockSpec((1,) + tuple(shape[1:]),
                            lambda l, nd=nd: (l,) + (0,) * (nd - 1))

    in_specs = [
        fixed((BS, H)),                 # embeddings (sum), LN'd in-kernel at l==0
        fixed((BS, BS)),                # combined additive attention mask
        fixed((4, H)),                  # [emb_g, emb_b, pooler_b, cls_b_pad]
        fixed((H, H)),                  # pooler weight
        fixed((H, CPAD)),               # classifier weight (padded)
        per_layer((L, H, 3 * H)),       # fused QKV weight
        per_layer((L, H, H)),           # attention output projection
        per_layer((L, H, I)),           # FFN intermediate
        per_layer((L, I, H)),           # FFN output
        per_layer((L, 8, IPAD)),        # packed per-layer vectors
    ]

    out = pl.pallas_call(
        fused_bert_kernel,
        out_shape=jax.ShapeDtypeStruct((B, CPAD), jnp.float32),
        grid=(L,),
        in_specs=in_specs,
        out_specs=pl.BlockSpec((B, CPAD), lambda l: (0, 0)),
        scratch_shapes=[pltpu.VMEM((BS, H), jnp.float32)],           # hidden-state carry
        compiler_params=pltpu.CompilerParams(
            dimension_semantics=("arbitrary",),
            vmem_limit_bytes=32 * 1024 * 1024),
    )(emb, mask2d, fp['gvec'], fp['pooler_w'], fp['cls_w_pad'],
      fp['wqkv'], fp['wo'], fp['wi'], fp['wo2'], fp['lvec'])

    # TODO(synk): at real BERT sizes (H=768, I=3072) the per-layer FFN weights should
    # be streamed over an inner K grid axis / pl.Buffered slabs for v7x's 64 MiB VMEM.
    return out[:, :C]


# ----------------------------- main ---------------------------------------------
if __name__ == "__main__":
    root = jax.random.PRNGKey(0)
    kp, kid, ktt = jax.random.split(root, 3)

    params = init_params(kp)
    fused_params = prepare_fused_params(params)

    input_ids = jax.random.randint(kid, (B, S), 0, VOCAB, dtype=jnp.int32)
    token_type_ids = jnp.zeros((B, S), dtype=jnp.int32)
    attn_masks = jnp.ones((B, S), dtype=jnp.float32)
    attn_masks = attn_masks.at[1, S - 3:].set(0.0)   # pad the tail of sample 1

    logits = text_bert_forward(fused_params, input_ids, token_type_ids, attn_masks)
    jax.block_until_ready(logits)
    assert logits.shape == (B, C) and logits.dtype == jnp.float32
    print("KERNEL_OK")
</pallas_src>

<mosaic_0001>
module attributes {stable_mosaic.version = 11 : i64} {
  func.func @fused_bert_kernel(%arg0: i32, %arg1: memref<16x128xf32, #tpu.memory_space<vmem>>, %arg2: memref<16x16xf32, #tpu.memory_space<vmem>>, %arg3: memref<4x128xf32, #tpu.memory_space<vmem>>, %arg4: memref<128x128xbf16, #tpu.memory_space<vmem>>, %arg5: memref<128x128xbf16, #tpu.memory_space<vmem>>, %arg6: memref<1x128x384xbf16, #tpu.memory_space<vmem>>, %arg7: memref<1x128x128xbf16, #tpu.memory_space<vmem>>, %arg8: memref<1x128x512xbf16, #tpu.memory_space<vmem>>, %arg9: memref<1x512x128xbf16, #tpu.memory_space<vmem>>, %arg10: memref<1x8x512xf32, #tpu.memory_space<vmem>>, %arg11: memref<2x128xf32, #tpu.memory_space<vmem>>, %arg12: memref<16x128xf32, #tpu.memory_space<vmem>>) attributes {dimension_semantics = [#tpu.dimension_semantics<arbitrary>], iteration_bounds = array<i64: 2>, scalar_prefetch = 0 : i64, scratch_operands = 1 : i64, tpu.core_type = #tpu.core_type<tc>, window_params = [{pipeline_mode = #tpu.pipeline_mode<synchronous>, transform_indices = @transform_0, window_bounds = array<i64: 16, 128>}, {pipeline_mode = #tpu.pipeline_mode<synchronous>, transform_indices = @transform_1, window_bounds = array<i64: 16, 16>}, {pipeline_mode = #tpu.pipeline_mode<synchronous>, transform_indices = @transform_2, window_bounds = array<i64: 4, 128>}, {pipeline_mode = #tpu.pipeline_mode<synchronous>, transform_indices = @transform_3, window_bounds = array<i64: 128, 128>}, {pipeline_mode = #tpu.pipeline_mode<synchronous>, transform_indices = @transform_4, window_bounds = array<i64: 128, 128>}, {transform_indices = @transform_5, window_bounds = array<i64: 1, 128, 384>}, {transform_indices = @transform_6, window_bounds = array<i64: 1, 128, 128>}, {transform_indices = @transform_7, window_bounds = array<i64: 1, 128, 512>}, {transform_indices = @transform_8, window_bounds = array<i64: 1, 512, 128>}, {transform_indices = @transform_9, window_bounds = array<i64: 1, 8, 512>}, {pipeline_mode = #tpu.pipeline_mode<synchronous>, transform_indices = @transform_10, window_bounds = array<i64: 2, 128>}]} {
    %c0_i32 = arith.constant 0 : i32
    %0 = arith.cmpi eq, %arg0, %c0_i32 : i32
    %1 = arith.extui %0 : i1 to i32
    %c0_i32_0 = arith.constant 0 : i32
    %2 = arith.cmpi ne, %1, %c0_i32_0 : i32
    scf.if %2 {
      %c0_43 = arith.constant 0 : index
      %c0_44 = arith.constant 0 : index
      %160 = vector.load %arg1[%c0_43, %c0_44] : memref<16x128xf32, #tpu.memory_space<vmem>>, vector<16x128xf32>
      %c0_45 = arith.constant 0 : index
      %c0_46 = arith.constant 0 : index
      %161 = vector.load %arg3[%c0_45, %c0_46] : memref<4x128xf32, #tpu.memory_space<vmem>>, vector<1x128xf32>
      %c1 = arith.constant 1 : index
      %c0_47 = arith.constant 0 : index
      %162 = vector.load %arg3[%c1, %c0_47] : memref<4x128xf32, #tpu.memory_space<vmem>>, vector<1x128xf32>
      %cst_48 = arith.constant dense<0.000000e+00> : vector<16xf32>
      %163 = vector.multi_reduction <add>, %160, %cst_48 [1] : vector<16x128xf32> to vector<16xf32>
      %164 = vector.shape_cast %163 : vector<16xf32> to vector<16x1xf32>
      %cst_49 = arith.constant 1.280000e+02 : f32
      %165 = vector.broadcast %cst_49 : f32 to vector<16x1xf32>
      %166 = arith.divf %164, %165 : vector<16x1xf32>
      %167 = vector.broadcast %166 : vector<16x1xf32> to vector<16x128xf32>
      %168 = arith.subf %160, %167 : vector<16x128xf32>
      %169 = arith.mulf %168, %168 : vector<16x128xf32>
      %cst_50 = arith.constant dense<0.000000e+00> : vector<16xf32>
      %170 = vector.multi_reduction <add>, %169, %cst_50 [1] : vector<16x128xf32> to vector<16xf32>
      %171 = vector.shape_cast %170 : vector<16xf32> to vector<16x1xf32>
      %cst_51 = arith.constant 1.280000e+02 : f32
      %172 = vector.broadcast %cst_51 : f32 to vector<16x1xf32>
      %173 = arith.divf %171, %172 : vector<16x1xf32>
      %174 = vector.broadcast %166 : vector<16x1xf32> to vector<16x128xf32>
      %175 = arith.subf %160, %174 : vector<16x128xf32>
      %cst_52 = arith.constant 9.99999996E-13 : f32
      %176 = vector.broadcast %cst_52 : f32 to vector<16x1xf32>
      %177 = arith.addf %173, %176 : vector<16x1xf32>
      %178 = math.rsqrt %177 : vector<16x1xf32>
      %179 = vector.broadcast %178 : vector<16x1xf32> to vector<16x128xf32>
      %180 = arith.mulf %175, %179 : vector<16x128xf32>
      %181 = vector.broadcast %161 : vector<1x128xf32> to vector<16x128xf32>
      %182 = arith.mulf %180, %181 : vector<16x128xf32>
      %183 = vector.broadcast %162 : vector<1x128xf32> to vector<16x128xf32>
      %184 = arith.addf %182, %183 : vector<16x128xf32>
      %c0_53 = arith.constant 0 : index
      %c0_54 = arith.constant 0 : index
      %185 = vector.load %arg12[%c0_53, %c0_54] : memref<16x128xf32, #tpu.memory_space<vmem>>, vector<16x128xf32>
      tpu.vector_store %arg12[%c0_53, %c0_54], %184 {strides = array<i32>} : memref<16x128xf32, #tpu.memory_space<vmem>>, vector<16x128xf32>,
    } else {
    }
    %c0 = arith.constant 0 : index
    %c0_1 = arith.constant 0 : index
    %3 = vector.load %arg12[%c0, %c0_1] : memref<16x128xf32, #tpu.memory_space<vmem>>, vector<16x128xf32>
    %4 = arith.truncf %3 : vector<16x128xf32> to vector<16x128xbf16>
    %c0_2 = arith.constant 0 : index
    %c0_3 = arith.constant 0 : index
    %c0_4 = arith.constant 0 : index
    %5 = vector.load %arg10[%c0_2, %c0_3, %c0_4] : memref<1x8x512xf32, #tpu.memory_space<vmem>>, vector<1x8x512xf32>
    %6 = vector.shape_cast %5 : vector<1x8x512xf32> to vector<8x512xf32>
    %7 = vector.extract_strided_slice %6 {offsets = [0, 0], sizes = [1, 384], strides = [1, 1]} : vector<8x512xf32> to vector<1x384xf32>
    %8 = vector.extract_strided_slice %6 {offsets = [1, 0], sizes = [1, 128], strides = [1, 1]} : vector<8x512xf32> to vector<1x128xf32>
    %9 = vector.extract_strided_slice %6 {offsets = [2, 0], sizes = [1, 128], strides = [1, 1]} : vector<8x512xf32> to vector<1x128xf32>
    %10 = vector.extract_strided_slice %6 {offsets = [3, 0], sizes = [1, 128], strides = [1, 1]} : vector<8x512xf32> to vector<1x128xf32>
    %11 = vector.extract_strided_slice %6 {offsets = [4, 0], sizes = [1, 512], strides = [1, 1]} : vector<8x512xf32> to vector<1x512xf32>
    %12 = vector.extract_strided_slice %6 {offsets = [5, 0], sizes = [1, 128], strides = [1, 1]} : vector<8x512xf32> to vector<1x128xf32>
    %13 = vector.extract_strided_slice %6 {offsets = [6, 0], sizes = [1, 128], strides = [1, 1]} : vector<8x512xf32> to vector<1x128xf32>
    %14 = vector.extract_strided_slice %6 {offsets = [7, 0], sizes = [1, 128], strides = [1, 1]} : vector<8x512xf32> to vector<1x128xf32>
    %c0_5 = arith.constant 0 : index
    %c0_6 = arith.constant 0 : index
    %c0_7 = arith.constant 0 : index
    %15 = vector.load %arg6[%c0_5, %c0_6, %c0_7] : memref<1x128x384xbf16, #tpu.memory_space<vmem>>, vector<1x128x384xbf16>
    %16 = vector.shape_cast %15 : vector<1x128x384xbf16> to vector<128x384xbf16>
    %cst = arith.constant dense<0.000000e+00> : vector<16x384xf32>
    %17 = tpu.matmul %4, %16, %cst {dimension_numbers = #tpu.dot_dimension_numbers<[1], [0], [0], [1], [0, 0, 1, 1], [], []>} : vector<16x128xbf16>, vector<128x384xbf16>, vector<16x384xf32> -> vector<16x384xf32>
    %18 = vector.broadcast %7 : vector<1x384xf32> to vector<16x384xf32>
    %19 = arith.addf %17, %18 : vector<16x384xf32>
    %20 = vector.extract_strided_slice %19 {offsets = [0, 0], sizes = [16, 128], strides = [1, 1]} : vector<16x384xf32> to vector<16x128xf32>
    %21 = vector.extract_strided_slice %19 {offsets = [0, 128], sizes = [16, 128], strides = [1, 1]} : vector<16x384xf32> to vector<16x128xf32>
    %22 = vector.extract_strided_slice %19 {offsets = [0, 256], sizes = [16, 128], strides = [1, 1]} : vector<16x384xf32> to vector<16x128xf32>
    %23 = vector.extract_strided_slice %20 {offsets = [0, 0], sizes = [16, 32], strides = [1, 1]} : vector<16x128xf32> to vector<16x32xf32>
    %24 = vector.extract_strided_slice %20 {offsets = [0, 32], sizes = [16, 32], strides = [1, 1]} : vector<16x128xf32> to vector<16x32xf32>
    %25 = vector.extract_strided_slice %20 {offsets = [0, 64], sizes = [16, 32], strides = [1, 1]} : vector<16x128xf32> to vector<16x32xf32>
    %26 = vector.extract_strided_slice %20 {offsets = [0, 96], sizes = [16, 32], strides = [1, 1]} : vector<16x128xf32> to vector<16x32xf32>
    %27 = vector.shape_cast %23 : vector<16x32xf32> to vector<1x16x32xf32>
    %28 = vector.shape_cast %24 : vector<16x32xf32> to vector<1x16x32xf32>
    %29 = vector.shape_cast %25 : vector<16x32xf32> to vector<1x16x32xf32>
    %30 = vector.shape_cast %26 : vector<16x32xf32> to vector<1x16x32xf32>
    %31 = tpu.concatenate %27, %28, %29, %30 in 0 : vector<1x16x32xf32>, vector<1x16x32xf32>, vector<1x16x32xf32>, vector<1x16x32xf32> -> vector<4x16x32xf32>
    %32 = arith.truncf %31 : vector<4x16x32xf32> to vector<4x16x32xbf16>
    %33 = vector.extract_strided_slice %21 {offsets = [0, 0], sizes = [16, 32], strides = [1, 1]} : vector<16x128xf32> to vector<16x32xf32>
    %34 = vector.extract_strided_slice %21 {offsets = [0, 32], sizes = [16, 32], strides = [1, 1]} : vector<16x128xf32> to vector<16x32xf32>
    %35 = vector.extract_strided_slice %21 {offsets = [0, 64], sizes = [16, 32], strides = [1, 1]} : vector<16x128xf32> to vector<16x32xf32>
    %36 = vector.extract_strided_slice %21 {offsets = [0, 96], sizes = [16, 32], strides = [1, 1]} : vector<16x128xf32> to vector<16x32xf32>
    %37 = vector.shape_cast %33 : vector<16x32xf32> to vector<1x16x32xf32>
    %38 = vector.shape_cast %34 : vector<16x32xf32> to vector<1x16x32xf32>
    %39 = vector.shape_cast %35 : vector<16x32xf32> to vector<1x16x32xf32>
    %40 = vector.shape_cast %36 : vector<16x32xf32> to vector<1x16x32xf32>
    %41 = tpu.concatenate %37, %38, %39, %40 in 0 : vector<1x16x32xf32>, vector<1x16x32xf32>, vector<1x16x32xf32>, vector<1x16x32xf32> -> vector<4x16x32xf32>
    %42 = arith.truncf %41 : vector<4x16x32xf32> to vector<4x16x32xbf16>
    %43 = vector.extract_strided_slice %22 {offsets = [0, 0], sizes = [16, 32], strides = [1, 1]} : vector<16x128xf32> to vector<16x32xf32>
    %44 = vector.extract_strided_slice %22 {offsets = [0, 32], sizes = [16, 32], strides = [1, 1]} : vector<16x128xf32> to vector<16x32xf32>
    %45 = vector.extract_strided_slice %22 {offsets = [0, 64], sizes = [16, 32], strides = [1, 1]} : vector<16x128xf32> to vector<16x32xf32>
    %46 = vector.extract_strided_slice %22 {offsets = [0, 96], sizes = [16, 32], strides = [1, 1]} : vector<16x128xf32> to vector<16x32xf32>
    %47 = vector.shape_cast %43 : vector<16x32xf32> to vector<1x16x32xf32>
    %48 = vector.shape_cast %44 : vector<16x32xf32> to vector<1x16x32xf32>
    %49 = vector.shape_cast %45 : vector<16x32xf32> to vector<1x16x32xf32>
    %50 = vector.shape_cast %46 : vector<16x32xf32> to vector<1x16x32xf32>
    %51 = tpu.concatenate %47, %48, %49, %50 in 0 : vector<1x16x32xf32>, vector<1x16x32xf32>, vector<1x16x32xf32>, vector<1x16x32xf32> -> vector<4x16x32xf32>
    %52 = arith.truncf %51 : vector<4x16x32xf32> to vector<4x16x32xbf16>
    "tpu.trace_start"() <{level = 10 : i32, message = "nqd,nkd->nqk"}> : () -> ()
    %cst_8 = arith.constant dense<0.000000e+00> : vector<4x16x16xf32>
    %53 = tpu.matmul %32, %42, %cst_8 {dimension_numbers = #tpu.dot_dimension_numbers<[2], [2], [1], [1], [0, 0, 0, 1, 1, 1], [0], [0]>} : vector<4x16x32xbf16>, vector<4x16x32xbf16>, vector<4x16x16xf32> -> vector<4x16x16xf32>
    "tpu.trace_stop"() : () -> ()
    %c0_9 = arith.constant 0 : index
    %c0_10 = arith.constant 0 : index
    %54 = vector.load %arg2[%c0_9, %c0_10] : memref<16x16xf32, #tpu.memory_space<vmem>>, vector<16x16xf32>
    %55 = vector.shape_cast %54 : vector<16x16xf32> to vector<1x16x16xf32>
    %56 = vector.broadcast %55 : vector<1x16x16xf32> to vector<4x16x16xf32>
    %57 = arith.addf %53, %56 : vector<4x16x16xf32>
    %cst_11 = arith.constant dense<0xFF800000> : vector<4x16xf32>
    %58 = vector.multi_reduction <maximumf>, %57, %cst_11 [2] : vector<4x16x16xf32> to vector<4x16xf32>
    %59 = vector.shape_cast %58 : vector<4x16xf32> to vector<4x16x1xf32>
    %60 = vector.broadcast %59 : vector<4x16x1xf32> to vector<4x16x16xf32>
    %61 = arith.subf %57, %60 : vector<4x16x16xf32>
    %62 = math.exp %61 : vector<4x16x16xf32>
    %cst_12 = arith.constant dense<0.000000e+00> : vector<4x16xf32>
    %63 = vector.multi_reduction <add>, %62, %cst_12 [2] : vector<4x16x16xf32> to vector<4x16xf32>
    %64 = vector.shape_cast %63 : vector<4x16xf32> to vector<4x16x1xf32>
    %65 = tpu.reciprocal %64 {approx = true} : vector<4x16x1xf32> -> vector<4x16x1xf32>
    %66 = vector.broadcast %65 : vector<4x16x1xf32> to vector<4x16x16xf32>
    %67 = arith.mulf %62, %66 : vector<4x16x16xf32>
    %68 = arith.truncf %67 : vector<4x16x16xf32> to vector<4x16x16xbf16>
    "tpu.trace_start"() <{level = 10 : i32, message = "nqk,nkd->nqd"}> : () -> ()
    %cst_13 = arith.constant dense<0.000000e+00> : vector<4x16x32xf32>
    %69 = tpu.matmul %68, %52, %cst_13 {dimension_numbers = #tpu.dot_dimension_numbers<[2], [1], [1], [2], [0, 0, 0, 1, 1, 2], [0], [0]>} : vector<4x16x16xbf16>, vector<4x16x32xbf16>, vector<4x16x32xf32> -> vector<4x16x32xf32>
    "tpu.trace_stop"() : () -> ()
    %70 = vector.extract_strided_slice %69 {offsets = [0, 0, 0], sizes = [1, 16, 32], strides = [1, 1, 1]} : vector<4x16x32xf32> to vector<1x16x32xf32>
    %71 = vector.shape_cast %70 : vector<1x16x32xf32> to vector<16x32xf32>
    %72 = vector.extract_strided_slice %69 {offsets = [1, 0, 0], sizes = [1, 16, 32], strides = [1, 1, 1]} : vector<4x16x32xf32> to vector<1x16x32xf32>
    %73 = vector.shape_cast %72 : vector<1x16x32xf32> to vector<16x32xf32>
    %74 = vector.extract_strided_slice %69 {offsets = [2, 0, 0], sizes = [1, 16, 32], strides = [1, 1, 1]} : vector<4x16x32xf32> to vector<1x16x32xf32>
    %75 = vector.shape_cast %74 : vector<1x16x32xf32> to vector<16x32xf32>
    %76 = vector.extract_strided_slice %69 {offsets = [3, 0, 0], sizes = [1, 16, 32], strides = [1, 1, 1]} : vector<4x16x32xf32> to vector<1x16x32xf32>
    %77 = vector.shape_cast %76 : vector<1x16x32xf32> to vector<16x32xf32>
    %78 = tpu.concatenate %71, %73, %75, %77 in 1 : vector<16x32xf32>, vector<16x32xf32>, vector<16x32xf32>, vector<16x32xf32> -> vector<16x128xf32>
    %79 = arith.truncf %78 : vector<16x128xf32> to vector<16x128xbf16>
    %c0_14 = arith.constant 0 : index
    %c0_15 = arith.constant 0 : index
    %c0_16 = arith.constant 0 : index
    %80 = vector.load %arg7[%c0_14, %c0_15, %c0_16] : memref<1x128x128xbf16, #tpu.memory_space<vmem>>, vector<1x128x128xbf16>
    %81 = vector.shape_cast %80 : vector<1x128x128xbf16> to vector<128x128xbf16>
    %cst_17 = arith.constant dense<0.000000e+00> : vector<16x128xf32>
    %82 = tpu.matmul %79, %81, %cst_17 {dimension_numbers = #tpu.dot_dimension_numbers<[1], [0], [0], [1], [0, 0, 1, 1], [], []>} : vector<16x128xbf16>, vector<128x128xbf16>, vector<16x128xf32> -> vector<16x128xf32>
    %83 = vector.broadcast %8 : vector<1x128xf32> to vector<16x128xf32>
    %84 = arith.addf %82, %83 : vector<16x128xf32>
    %85 = arith.addf %84, %3 : vector<16x128xf32>
    %cst_18 = arith.constant dense<0.000000e+00> : vector<16xf32>
    %86 = vector.multi_reduction <add>, %85, %cst_18 [1] : vector<16x128xf32> to vector<16xf32>
    %87 = vector.shape_cast %86 : vector<16xf32> to vector<16x1xf32>
    %cst_19 = arith.constant 1.280000e+02 : f32
    %88 = vector.broadcast %cst_19 : f32 to vector<16x1xf32>
    %89 = arith.divf %87, %88 : vector<16x1xf32>
    %90 = vector.broadcast %89 : vector<16x1xf32> to vector<16x128xf32>
    %91 = arith.subf %85, %90 : vector<16x128xf32>
    %92 = arith.mulf %91, %91 : vector<16x128xf32>
    %cst_20 = arith.constant dense<0.000000e+00> : vector<16xf32>
    %93 = vector.multi_reduction <add>, %92, %cst_20 [1] : vector<16x128xf32> to vector<16xf32>
    %94 = vector.shape_cast %93 : vector<16xf32> to vector<16x1xf32>
    %cst_21 = arith.constant 1.280000e+02 : f32
    %95 = vector.broadcast %cst_21 : f32 to vector<16x1xf32>
    %96 = arith.divf %94, %95 : vector<16x1xf32>
    %97 = vector.broadcast %89 : vector<16x1xf32> to vector<16x128xf32>
    %98 = arith.subf %85, %97 : vector<16x128xf32>
    %cst_22 = arith.constant 9.99999996E-13 : f32
    %99 = vector.broadcast %cst_22 : f32 to vector<16x1xf32>
    %100 = arith.addf %96, %99 : vector<16x1xf32>
    %101 = math.rsqrt %100 : vector<16x1xf32>
    %102 = vector.broadcast %101 : vector<16x1xf32> to vector<16x128xf32>
    %103 = arith.mulf %98, %102 : vector<16x128xf32>
    %104 = vector.broadcast %9 : vector<1x128xf32> to vector<16x128xf32>
    %105 = arith.mulf %103, %104 : vector<16x128xf32>
    %106 = vector.broadcast %10 : vector<1x128xf32> to vector<16x128xf32>
    %107 = arith.addf %105, %106 : vector<16x128xf32>
    %108 = arith.truncf %107 : vector<16x128xf32> to vector<16x128xbf16>
    %c0_23 = arith.constant 0 : index
    %c0_24 = arith.constant 0 : index
    %c0_25 = arith.constant 0 : index
    %109 = vector.load %arg8[%c0_23, %c0_24, %c0_25] : memref<1x128x512xbf16, #tpu.memory_space<vmem>>, vector<1x128x512xbf16>
    %110 = vector.shape_cast %109 : vector<1x128x512xbf16> to vector<128x512xbf16>
    %cst_26 = arith.constant dense<0.000000e+00> : vector<16x512xf32>
    %111 = tpu.matmul %108, %110, %cst_26 {dimension_numbers = #tpu.dot_dimension_numbers<[1], [0], [0], [1], [0, 0, 1, 1], [], []>} : vector<16x128xbf16>, vector<128x512xbf16>, vector<16x512xf32> -> vector<16x512xf32>
    %112 = vector.broadcast %11 : vector<1x512xf32> to vector<16x512xf32>
    %113 = arith.addf %111, %112 : vector<16x512xf32>
    %cst_27 = arith.constant 5.000000e-01 : f32
    %114 = vector.broadcast %cst_27 : f32 to vector<16x512xf32>
    %115 = arith.mulf %114, %113 : vector<16x512xf32>
    %cst_28 = arith.constant 4.471500e-02 : f32
    %116 = vector.broadcast %cst_28 : f32 to vector<16x512xf32>
    %117 = arith.mulf %116, %113 : vector<16x512xf32>
    %118 = arith.mulf %117, %113 : vector<16x512xf32>
    %119 = arith.mulf %118, %113 : vector<16x512xf32>
    %120 = arith.addf %113, %119 : vector<16x512xf32>
    %cst_29 = arith.constant 0.797884583 : f32
    %121 = vector.broadcast %cst_29 : f32 to vector<16x512xf32>
    %122 = arith.mulf %121, %120 : vector<16x512xf32>
    %123 = math.tanh %122 : vector<16x512xf32>
    %cst_30 = arith.constant 1.000000e+00 : f32
    %124 = vector.broadcast %cst_30 : f32 to vector<16x512xf32>
    %125 = arith.addf %124, %123 : vector<16x512xf32>
    %126 = arith.mulf %115, %125 : vector<16x512xf32>
    %127 = arith.truncf %126 : vector<16x512xf32> to vector<16x512xbf16>
    %c0_31 = arith.constant 0 : index
    %c0_32 = arith.constant 0 : index
    %c0_33 = arith.constant 0 : index
    %128 = vector.load %arg9[%c0_31, %c0_32, %c0_33] : memref<1x512x128xbf16, #tpu.memory_space<vmem>>, vector<1x512x128xbf16>
    %129 = vector.shape_cast %128 : vector<1x512x128xbf16> to vector<512x128xbf16>
    %cst_34 = arith.constant dense<0.000000e+00> : vector<16x128xf32>
    %130 = tpu.matmul %127, %129, %cst_34 {dimension_numbers = #tpu.dot_dimension_numbers<[1], [0], [0], [1], [0, 0, 1, 1], [], []>} : vector<16x512xbf16>, vector<512x128xbf16>, vector<16x128xf32> -> vector<16x128xf32>
    %131 = vector.broadcast %12 : vector<1x128xf32> to vector<16x128xf32>
    %132 = arith.addf %130, %131 : vector<16x128xf32>
    %133 = arith.addf %132, %107 : vector<16x128xf32>
    %cst_35 = arith.constant dense<0.000000e+00> : vector<16xf32>
    %134 = vector.multi_reduction <add>, %133, %cst_35 [1] : vector<16x128xf32> to vector<16xf32>
    %135 = vector.shape_cast %134 : vector<16xf32> to vector<16x1xf32>
    %cst_36 = arith.constant 1.280000e+02 : f32
    %136 = vector.broadcast %cst_36 : f32 to vector<16x1xf32>
    %137 = arith.divf %135, %136 : vector<16x1xf32>
    %138 = vector.broadcast %137 : vector<16x1xf32> to vector<16x128xf32>
    %139 = arith.subf %133, %138 : vector<16x128xf32>
    %140 = arith.mulf %139, %139 : vector<16x128xf32>
    %cst_37 = arith.constant dense<0.000000e+00> : vector<16xf32>
    %141 = vector.multi_reduction <add>, %140, %cst_37 [1] : vector<16x128xf32> to vector<16xf32>
    %142 = vector.shape_cast %141 : vector<16xf32> to vector<16x1xf32>
    %cst_38 = arith.constant 1.280000e+02 : f32
    %143 = vector.broadcast %cst_38 : f32 to vector<16x1xf32>
    %144 = arith.divf %142, %143 : vector<16x1xf32>
    %145 = vector.broadcast %137 : vector<16x1xf32> to vector<16x128xf32>
    %146 = arith.subf %133, %145 : vector<16x128xf32>
    %cst_39 = arith.constant 9.99999996E-13 : f32
    %147 = vector.broadcast %cst_39 : f32 to vector<16x1xf32>
    %148 = arith.addf %144, %147 : vector<16x1xf32>
    %149 = math.rsqrt %148 : vector<16x1xf32>
    %150 = vector.broadcast %149 : vector<16x1xf32> to vector<16x128xf32>
    %151 = arith.mulf %146, %150 : vector<16x128xf32>
    %152 = vector.broadcast %13 : vector<1x128xf32> to vector<16x128xf32>
    %153 = arith.mulf %151, %152 : vector<16x128xf32>
    %154 = vector.broadcast %14 : vector<1x128xf32> to vector<16x128xf32>
    %155 = arith.addf %153, %154 : vector<16x128xf32>
    %c0_40 = arith.constant 0 : index
    %c0_41 = arith.constant 0 : index
    %156 = vector.load %arg12[%c0_40, %c0_41] : memref<16x128xf32, #tpu.memory_space<vmem>>, vector<16x128xf32>
    tpu.vector_store %arg12[%c0_40, %c0_41], %155 {strides = array<i32>} : memref<16x128xf32, #tpu.memory_space<vmem>>, vector<16x128xf32>,
    %c1_i32 = arith.constant 1 : i32
    %157 = arith.cmpi eq, %arg0, %c1_i32 : i32
    %158 = arith.extui %157 : i1 to i32
    %c0_i32_42 = arith.constant 0 : i32
    %159 = arith.cmpi ne, %158, %c0_i32_42 : i32
    scf.if %159 {
      %160 = vector.shape_cast %155 : vector<16x128xf32> to vector<2x8x128xf32>
      %161 = vector.extract_strided_slice %160 {offsets = [0, 0, 0], sizes = [2, 1, 128], strides = [1, 1, 1]} : vector<2x8x128xf32> to vector<2x1x128xf32>
      %162 = vector.shape_cast %161 : vector<2x1x128xf32> to vector<2x128xf32>
      %163 = arith.truncf %162 : vector<2x128xf32> to vector<2x128xbf16>
      %c0_43 = arith.constant 0 : index
      %c0_44 = arith.constant 0 : index
      %164 = vector.load %arg4[%c0_43, %c0_44] : memref<128x128xbf16, #tpu.memory_space<vmem>>, vector<128x128xbf16>
      %cst_45 = arith.constant dense<0.000000e+00> : vector<2x128xf32>
      %165 = tpu.matmul %163, %164, %cst_45 {dimension_numbers = #tpu.dot_dimension_numbers<[1], [0], [0], [1], [0, 0, 1, 1], [], []>} : vector<2x128xbf16>, vector<128x128xbf16>, vector<2x128xf32> -> vector<2x128xf32>
      %c2 = arith.constant 2 : index
      %c0_46 = arith.constant 0 : index
      %166 = vector.load %arg3[%c2, %c0_46] : memref<4x128xf32, #tpu.memory_space<vmem>>, vector<1x128xf32>
      %167 = vector.broadcast %166 : vector<1x128xf32> to vector<2x128xf32>
      %168 = arith.addf %165, %167 : vector<2x128xf32>
      %169 = math.tanh %168 : vector<2x128xf32>
      %170 = arith.truncf %169 : vector<2x128xf32> to vector<2x128xbf16>
      %c0_47 = arith.constant 0 : index
      %c0_48 = arith.constant 0 : index
      %171 = vector.load %arg5[%c0_47, %c0_48] : memref<128x128xbf16, #tpu.memory_space<vmem>>, vector<128x128xbf16>
      %cst_49 = arith.constant dense<0.000000e+00> : vector<2x128xf32>
      %172 = tpu.matmul %170, %171, %cst_49 {dimension_numbers = #tpu.dot_dimension_numbers<[1], [0], [0], [1], [0, 0, 1, 1], [], []>} : vector<2x128xbf16>, vector<128x128xbf16>, vector<2x128xf32> -> vector<2x128xf32>
      %c3 = arith.constant 3 : index
      %c0_50 = arith.constant 0 : index
      %173 = vector.load %arg3[%c3, %c0_50] : memref<4x128xf32, #tpu.memory_space<vmem>>, vector<1x128xf32>
      %174 = vector.broadcast %173 : vector<1x128xf32> to vector<2x128xf32>
      %175 = arith.addf %172, %174 : vector<2x128xf32>
      %c0_51 = arith.constant 0 : index
      %c0_52 = arith.constant 0 : index
      %176 = vector.load %arg11[%c0_51, %c0_52] : memref<2x128xf32, #tpu.memory_space<vmem>>, vector<2x128xf32>
      tpu.vector_store %arg11[%c0_51, %c0_52], %175 {strides = array<i32>} : memref<2x128xf32, #tpu.memory_space<vmem>>, vector<2x128xf32>,
    } else {
    }
    return
  }
  func.func @transform_0(%arg0: i32) -> (i32, i32) {
    %c0_i32 = arith.constant 0 : i32
    %c0_i32_0 = arith.constant 0 : i32
    %c0_i32_1 = arith.constant 0 : i32
    return %c0_i32, %c0_i32_0 : i32, i32
  }
  func.func @transform_1(%arg0: i32) -> (i32, i32) {
    %c0_i32 = arith.constant 0 : i32
    %c0_i32_0 = arith.constant 0 : i32
    %c0_i32_1 = arith.constant 0 : i32
    return %c0_i32, %c0_i32_0 : i32, i32
  }
  func.func @transform_2(%arg0: i32) -> (i32, i32) {
    %c0_i32 = arith.constant 0 : i32
    %c0_i32_0 = arith.constant 0 : i32
    %c0_i32_1 = arith.constant 0 : i32
    return %c0_i32, %c0_i32_0 : i32, i32
  }
  func.func @transform_3(%arg0: i32) -> (i32, i32) {
    %c0_i32 = arith.constant 0 : i32
    %c0_i32_0 = arith.constant 0 : i32
    %c0_i32_1 = arith.constant 0 : i32
    return %c0_i32, %c0_i32_0 : i32, i32
  }
  func.func @transform_4(%arg0: i32) -> (i32, i32) {
    %c0_i32 = arith.constant 0 : i32
    %c0_i32_0 = arith.constant 0 : i32
    %c0_i32_1 = arith.constant 0 : i32
    return %c0_i32, %c0_i32_0 : i32, i32
  }
  func.func @transform_5(%arg0: i32) -> (i32, i32, i32) {
    %c0_i32 = arith.constant 0 : i32
    %c0_i32_0 = arith.constant 0 : i32
    %c0_i32_1 = arith.constant 0 : i32
    return %arg0, %c0_i32, %c0_i32_0 : i32, i32, i32
  }
  func.func @transform_6(%arg0: i32) -> (i32, i32, i32) {
    %c0_i32 = arith.constant 0 : i32
    %c0_i32_0 = arith.constant 0 : i32
    %c0_i32_1 = arith.constant 0 : i32
    return %arg0, %c0_i32, %c0_i32_0 : i32, i32, i32
  }
  func.func @transform_7(%arg0: i32) -> (i32, i32, i32) {
    %c0_i32 = arith.constant 0 : i32
    %c0_i32_0 = arith.constant 0 : i32
    %c0_i32_1 = arith.constant 0 : i32
    return %arg0, %c0_i32, %c0_i32_0 : i32, i32, i32
  }
  func.func @transform_8(%arg0: i32) -> (i32, i32, i32) {
    %c0_i32 = arith.constant 0 : i32
    %c0_i32_0 = arith.constant 0 : i32
    %c0_i32_1 = arith.constant 0 : i32
    return %arg0, %c0_i32, %c0_i32_0 : i32, i32, i32
  }
  func.func @transform_9(%arg0: i32) -> (i32, i32, i32) {
    %c0_i32 = arith.constant 0 : i32
    %c0_i32_0 = arith.constant 0 : i32
    %c0_i32_1 = arith.constant 0 : i32
    return %arg0, %c0_i32, %c0_i32_0 : i32, i32, i32
  }
  func.func @transform_10(%arg0: i32) -> (i32, i32) {
    %c0_i32 = arith.constant 0 : i32
    %c0_i32_0 = arith.constant 0 : i32
    %c0_i32_1 = arith.constant 0 : i32
    return %c0_i32, %c0_i32_0 : i32, i32
  }
}

</mosaic_0001>

<llo_original>
// kernel: text_bert_forward.1
$region0: #{text_bert_forward.1}
  #allocation0 [shape = 'u32[]', space=smem, size = 0x4, offset = 0x4, fixed_abs, tag = 'smem constant byte address 0x4 - core index']
  #allocation1 [shape = 'u32[144,128]{1,0:T(1,128)}', space=vmem, size = 0x12000, scoped, tag = 'internal scratch']
  #allocation2 [shape = 'f32[16,128]{1,0:T(8,128)}', space=vmem, size = 0x2000, scoped, tag = 'scratch operand']
  %s0 = inlined_call_operand.vmem [shape: f32[16,128], index: 0, kind: input, shape index: {}]
  %s1 = inlined_call_operand.vmem [shape: f32[16,16], index: 1, kind: input, shape index: {}]
  %s2 = inlined_call_operand.vmem [shape: f32[4,128], index: 2, kind: input, shape index: {}]
  %s3 = inlined_call_operand.vmem [shape: bf16[128,128], index: 3, kind: input, shape index: {}]
  %s4 = inlined_call_operand.vmem [shape: bf16[128,128], index: 4, kind: input, shape index: {}]
  %s5 = inlined_call_operand.hbm [shape: bf16[2,128,384], index: 5, kind: input, shape index: {}]
  %s6 = inlined_call_operand.vmem [shape: bf16[2,128,128], index: 6, kind: input, shape index: {}]
  %s7 = inlined_call_operand.hbm [shape: bf16[2,128,512], index: 7, kind: input, shape index: {}]
  %s8 = inlined_call_operand.hbm [shape: bf16[2,512,128], index: 8, kind: input, shape index: {}]
  %s9 = inlined_call_operand.vmem [shape: f32[2,8,512], index: 9, kind: input, shape index: {}]
  %s10 = inlined_call_operand.hbm [shape: f32[2,128], index: 10, kind: output, shape index: {}]
  %s11 = sld [smem:[#allocation0]]
  $region93: #{text_bert_forward.1} parent=0
    _
  %s13 = ssub.s32 1, %s11
  %s14 = scalar_select 0, %s13, %s11
  $region1: #{text_bert_forward.1} parent=0
    #allocation3 [shape = 'u8[196608]{0}', space=vmem, size = 0x30000, scoped, tag = 'input window, operand 5']
    #allocation4 [shape = 's32[2]{0}', space=sflag, size = 0x8, scoped, tag = 'scoped memory for text_bert_forward.1']
    #allocation5 [shape = 's32[2]{0}', space=sflag, size = 0x8, scoped, tag = 'scoped memory for text_bert_forward.1']
    #allocation6 [shape = 'u8[262144]{0}', space=vmem, size = 0x40000, scoped, tag = 'input window, operand 7']
    #allocation7 [shape = 's32[2]{0}', space=sflag, size = 0x8, scoped, tag = 'scoped memory for text_bert_forward.1']
    #allocation8 [shape = 'u8[262144]{0}', space=vmem, size = 0x40000, scoped, tag = 'input window, operand 8']
    #allocation9 [shape = 'u8[1024]{0}', space=vmem, size = 0x400, scoped, tag = 'output window, operand 0, single buffered']
    %15 = vsyncpa [#allocation4], 0
    %s16 = scalar_lea.sflag [#allocation4], 1
    %17 = vsyncpa %s16, 0
    %18 = vsyncpa [#allocation7], 0
    %s19 = scalar_lea.sflag [#allocation7], 1
    %20 = vsyncpa %s19, 0
    %21 = vsyncpa [#allocation5], 0
    loop: start=0, step=1, limit=4
    $region2: #{text_bert_forward.1} parent=1 // loop_pre_header
      _
    $region3: #{text_bert_forward.1} parent=1 // loop_header
      %s23 = sphi 0, %s27
      %p24 = scmp.ge.s32.totalorder %s23, 4
      %s31 = sphi 0, %s31
      %s33 = sphi 0, %s31
      %s34 = sphi 0, %s33
      %s48 = sphi 0, %s34
      %s52 = sphi 0, %s52
      %s54 = sphi 0, %s52
      %s55 = sphi 0, %s54
      %s69 = sphi 0, %s55
      %s73 = sphi 0, %s73
      %s75 = sphi 0, %s73
      %s76 = sphi 0, %s75
      %s90 = sphi 0, %s76
      %s94 = sphi 0, %s94
      %s96 = sphi 0, %s94
      %s97 = sphi 0, %s96
      %s111 = sphi 0, %s97
      %s115 = sphi 0, %s115
      %s117 = sphi 0, %s115
      %s118 = sphi 0, %s117
      %s132 = sphi 0, %s118
      %s138 = sphi 0, %s140
      %s141 = sphi 0, %s138
      %s142 = sphi 0, %s141
      %s158 = sphi 0, %s142
      %s164 = sphi 0, %s166
      %s167 = sphi 0, %s164
      %s168 = sphi 0, %s167
      %s184 = sphi 0, %s168
      %s190 = sphi 0, %s192
      %s193 = sphi 0, %s190
      %s194 = sphi 0, %s193
      %s210 = sphi 0, %s194
      %s216 = sphi 0, %s218
      %s219 = sphi 0, %s216
      %s220 = sphi 0, %s219
      %s236 = sphi 0, %s220
      %s242 = sphi 0, %s244
      %s245 = sphi 0, %s242
      %s246 = sphi 0, %s245
      %s262 = sphi 0, %s246
      %s266 = sphi 0, %s266
      %s268 = sphi 0, %s266
      %s269 = sphi 0, %s268
      %s283 = sphi 0, %s269
    $region4: #{text_bert_forward.1} parent=1 // loop_header_branch
      %26 = sbr.rel (%p24) target = $region8
    $region5: #{text_bert_forward.1} parent=1 // loop_body
      %s28 = ssub.s32 %s23, 1
      %s29 = ssub.s32 %s23, 2
      %s30 = sadd.s32 %s23, 1
      %s32 = sadd.s32 %s31, 1
      %p35 = scmp.eq.s32.totalorder %s23, 1
      %p36 = scmp.ne.s32.totalorder %s31, %s33
      %p37 = scmp.eq.s32.totalorder %s23, 0
      %p38 = por %p36, %p37
      %p39 = scmp.ne.s32.totalorder %s31, %s33
      %p40 = scmp.eq.s32.totalorder %s28, 1
      %p41 = por %p39, %p40
      %p42 = scmp.ne.s32.totalorder %s33, %s34
      %p43 = scmp.eq.s32.totalorder %s28, 0
      %p44 = por %p42, %p43
      %p45 = scmp.ne.s32.totalorder %s33, %s34
      %p46 = scmp.eq.s32.totalorder %s29, 1
      %p47 = por %p45, %p46
      %p49 = scmp.ne.s32.totalorder %s34, %s48
      %p50 = scmp.eq.s32.totalorder %s29, 0
      %p51 = por %p49, %p50
      %s53 = sadd.s32 %s52, 1
      %p56 = scmp.eq.s32.totalorder %s23, 1
      %p57 = scmp.ne.s32.totalorder %s52, %s54
      %p58 = scmp.eq.s32.totalorder %s23, 0
      %p59 = por %p57, %p58
      %p60 = scmp.ne.s32.totalorder %s52, %s54
      %p61 = scmp.eq.s32.totalorder %s28, 1
      %p62 = por %p60, %p61
      %p63 = scmp.ne.s32.totalorder %s54, %s55
      %p64 = scmp.eq.s32.totalorder %s28, 0
      %p65 = por %p63, %p64
      %p66 = scmp.ne.s32.totalorder %s54, %s55
      %p67 = scmp.eq.s32.totalorder %s29, 1
      %p68 = por %p66, %p67
      %p70 = scmp.ne.s32.totalorder %s55, %s69
      %p71 = scmp.eq.s32.totalorder %s29, 0
      %p72 = por %p70, %p71
      %s74 = sadd.s32 %s73, 1
      %p77 = scmp.eq.s32.totalorder %s23, 1
      %p78 = scmp.ne.s32.totalorder %s73, %s75
      %p79 = scmp.eq.s32.totalorder %s23, 0
      %p80 = por %p78, %p79
      %p81 = scmp.ne.s32.totalorder %s73, %s75
      %p82 = scmp.eq.s32.totalorder %s28, 1
      %p83 = por %p81, %p82
      %p84 = scmp.ne.s32.totalorder %s75, %s76
      %p85 = scmp.eq.s32.totalorder %s28, 0
      %p86 = por %p84, %p85
      %p87 = scmp.ne.s32.totalorder %s75, %s76
      %p88 = scmp.eq.s32.totalorder %s29, 1
      %p89 = por %p87, %p88
      %p91 = scmp.ne.s32.totalorder %s76, %s90
      %p92 = scmp.eq.s32.totalorder %s29, 0
      %p93 = por %p91, %p92
      %s95 = sadd.s32 %s94, 1
      %p98 = scmp.eq.s32.totalorder %s23, 1
      %p99 = scmp.ne.s32.totalorder %s94, %s96
      %p100 = scmp.eq.s32.totalorder %s23, 0
      %p101 = por %p99, %p100
      %p102 = scmp.ne.s32.totalorder %s94, %s96
      %p103 = scmp.eq.s32.totalorder %s28, 1
      %p104 = por %p102, %p103
      %p105 = scmp.ne.s32.totalorder %s96, %s97
      %p106 = scmp.eq.s32.totalorder %s28, 0
      %p107 = por %p105, %p106
      %p108 = scmp.ne.s32.totalorder %s96, %s97
      %p109 = scmp.eq.s32.totalorder %s29, 1
      %p110 = por %p108, %p109
      %p112 = scmp.ne.s32.totalorder %s97, %s111
      %p113 = scmp.eq.s32.totalorder %s29, 0
      %p114 = por %p112, %p113
      %s116 = sadd.s32 %s115, 1
      %p119 = scmp.eq.s32.totalorder %s23, 1
      %p120 = scmp.ne.s32.totalorder %s115, %s117
      %p121 = scmp.eq.s32.totalorder %s23, 0
      %p122 = por %p120, %p121
      %p123 = scmp.ne.s32.totalorder %s115, %s117
      %p124 = scmp.eq.s32.totalorder %s28, 1
      %p125 = por %p123, %p124
      %p126 = scmp.ne.s32.totalorder %s117, %s118
      %p127 = scmp.eq.s32.totalorder %s28, 0
      %p128 = por %p126, %p127
      %p129 = scmp.ne.s32.totalorder %s117, %s118
      %p130 = scmp.eq.s32.totalorder %s29, 1
      %p131 = por %p129, %p130
      %p133 = scmp.ne.s32.totalorder %s118, %s132
      %p134 = scmp.eq.s32.totalorder %s29, 0
      %p135 = por %p133, %p134
      %s136 = ssub.s32 %s23, %s30
      %p137 = scmp.eq.s32.totalorder %s136, 0
      %s139 = sadd.s32 %s138, 1
      %s140 = scalar_select %p137, %s138, %s139
      %p143 = pneg %p137
      %p144 = scmp.eq.s32.totalorder %s23, 1
      %p145 = por %p143, %p144
      %p146 = scmp.ne.s32.totalorder %s138, %s141
      %p147 = scmp.eq.s32.totalorder %s23, 0
      %p148 = por %p146, %p147
      %p149 = scmp.ne.s32.totalorder %s138, %s141
      %p150 = scmp.eq.s32.totalorder %s28, 1
      %p151 = por %p149, %p150
      %p152 = scmp.ne.s32.totalorder %s141, %s142
      %p153 = scmp.eq.s32.totalorder %s28, 0
      %p154 = por %p152, %p153
      %p155 = scmp.ne.s32.totalorder %s141, %s142
      %p156 = scmp.eq.s32.totalorder %s29, 1
      %p157 = por %p155, %p156
      %p159 = scmp.ne.s32.totalorder %s142, %s158
      %p160 = scmp.eq.s32.totalorder %s29, 0
      %p161 = por %p159, %p160
      %s162 = ssub.s32 %s23, %s30
      %p163 = scmp.eq.s32.totalorder %s162, 0
      %s165 = sadd.s32 %s164, 1
      %s166 = scalar_select %p163, %s164, %s165
      %p169 = pneg %p163
      %p170 = scmp.eq.s32.totalorder %s23, 1
      %p171 = por %p169, %p170
      %p172 = scmp.ne.s32.totalorder %s164, %s167
      %p173 = scmp.eq.s32.totalorder %s23, 0
      %p174 = por %p172, %p173
      %p175 = scmp.ne.s32.totalorder %s164, %s167
      %p176 = scmp.eq.s32.totalorder %s28, 1
      %p177 = por %p175, %p176
      %p178 = scmp.ne.s32.totalorder %s167, %s168
      %p179 = scmp.eq.s32.totalorder %s28, 0
      %p180 = por %p178, %p179
      %p181 = scmp.ne.s32.totalorder %s167, %s168
      %p182 = scmp.eq.s32.totalorder %s29, 1
      %p183 = por %p181, %p182
      %p185 = scmp.ne.s32.totalorder %s168, %s184
      %p186 = scmp.eq.s32.totalorder %s29, 0
      %p187 = por %p185, %p186
      %s188 = ssub.s32 %s23, %s30
      %p189 = scmp.eq.s32.totalorder %s188, 0
      %s191 = sadd.s32 %s190, 1
      %s192 = scalar_select %p189, %s190, %s191
      %p195 = pneg %p189
      %p196 = scmp.eq.s32.totalorder %s23, 1
      %p197 = por %p195, %p196
      %p198 = scmp.ne.s32.totalorder %s190, %s193
      %p199 = scmp.eq.s32.totalorder %s23, 0
      %p200 = por %p198, %p199
      %p201 = scmp.ne.s32.totalorder %s190, %s193
      %p202 = scmp.eq.s32.totalorder %s28, 1
      %p203 = por %p201, %p202
      %p204 = scmp.ne.s32.totalorder %s193, %s194
      %p205 = scmp.eq.s32.totalorder %s28, 0
      %p206 = por %p204, %p205
      %p207 = scmp.ne.s32.totalorder %s193, %s194
      %p208 = scmp.eq.s32.totalorder %s29, 1
      %p209 = por %p207, %p208
      %p211 = scmp.ne.s32.totalorder %s194, %s210
      %p212 = scmp.eq.s32.totalorder %s29, 0
      %p213 = por %p211, %p212
      %s214 = ssub.s32 %s23, %s30
      %p215 = scmp.eq.s32.totalorder %s214, 0
      %s217 = sadd.s32 %s216, 1
      %s218 = scalar_select %p215, %s216, %s217
      %p221 = pneg %p215
      %p222 = scmp.eq.s32.totalorder %s23, 1
      %p223 = por %p221, %p222
      %p224 = scmp.ne.s32.totalorder %s216, %s219
      %p225 = scmp.eq.s32.totalorder %s23, 0
      %p226 = por %p224, %p225
      %p227 = scmp.ne.s32.totalorder %s216, %s219
      %p228 = scmp.eq.s32.totalorder %s28, 1
      %p229 = por %p227, %p228
      %p230 = scmp.ne.s32.totalorder %s219, %s220
      %p231 = scmp.eq.s32.totalorder %s28, 0
      %p232 = por %p230, %p231
      %p233 = scmp.ne.s32.totalorder %s219, %s220
      %p234 = scmp.eq.s32.totalorder %s29, 1
      %p235 = por %p233, %p234
      %p237 = scmp.ne.s32.totalorder %s220, %s236
      %p238 = scmp.eq.s32.totalorder %s29, 0
      %p239 = por %p237, %p238
      %s240 = ssub.s32 %s23, %s30
      %p241 = scmp.eq.s32.totalorder %s240, 0
      %s243 = sadd.s32 %s242, 1
      %s244 = scalar_select %p241, %s242, %s243
      %p247 = pneg %p241
      %p248 = scmp.eq.s32.totalorder %s23, 1
      %p249 = por %p247, %p248
      %p250 = scmp.ne.s32.totalorder %s242, %s245
      %p251 = scmp.eq.s32.totalorder %s23, 0
      %p252 = por %p250, %p251
      %p253 = scmp.ne.s32.totalorder %s242, %s245
      %p254 = scmp.eq.s32.totalorder %s28, 1
      %p255 = por %p253, %p254
      %p256 = scmp.ne.s32.totalorder %s245, %s246
      %p257 = scmp.eq.s32.totalorder %s28, 0
      %p258 = por %p256, %p257
      %p259 = scmp.ne.s32.totalorder %s245, %s246
      %p260 = scmp.eq.s32.totalorder %s29, 1
      %p261 = por %p259, %p260
      %p263 = scmp.ne.s32.totalorder %s246, %s262
      %p264 = scmp.eq.s32.totalorder %s29, 0
      %p265 = por %p263, %p264
      %s267 = sadd.s32 %s266, 1
      %p270 = scmp.eq.s32.totalorder %s23, 1
      %p271 = scmp.ne.s32.totalorder %s266, %s268
      %p272 = scmp.eq.s32.totalorder %s23, 0
      %p273 = por %p271, %p272
      %p274 = scmp.ne.s32.totalorder %s266, %s268
      %p275 = scmp.eq.s32.totalorder %s28, 1
      %p276 = por %p274, %p275
      %p277 = scmp.ne.s32.totalorder %s268, %s269
      %p278 = scmp.eq.s32.totalorder %s28, 0
      %p279 = por %p277, %p278
      %p280 = scmp.ne.s32.totalorder %s268, %s269
      %p281 = scmp.eq.s32.totalorder %s29, 1
      %p282 = por %p280, %p281
      %p284 = scmp.ne.s32.totalorder %s269, %s283
      %p285 = scmp.eq.s32.totalorder %s29, 0
      %p286 = por %p284, %p285
      %p287 = scmp.le.s32.totalorder 1, %s23
      %p288 = scmp.lt.s32.totalorder %s23, 3
      %p289 = pnand %p287, %p288
      %p290 = pneg %p289
      // Predicated region
      $region9: #{text_bert_forward.1} parent=5 // pred_check
        _
      $region10: #{text_bert_forward.1} parent=5 // pred_check_branch
        %292 = sbr.rel (%p289) target = $region12
      $region11: #{text_bert_forward.1} parent=5 // pred_region
        %s293 = ssub.s32 %s23, 1
        // Predicated region
        $region13: #{text_bert_forward.1} parent=11 // pred_check
          %p294 = pneg %p44
        $region14: #{text_bert_forward.1} parent=11 // pred_check_branch
          %296 = sbr.rel (%p294) target = $region16
        $region15: #{text_bert_forward.1} parent=11 // pred_region
          _
        $region16: #{text_bert_forward.1} parent=11 // pred_fallthru
          _
        // Predicated region
        $region17: #{text_bert_forward.1} parent=11 // pred_check
          %p297 = pneg %p65
        $region18: #{text_bert_forward.1} parent=11 // pred_check_branch
          %299 = sbr.rel (%p297) target = $region20
        $region19: #{text_bert_forward.1} parent=11 // pred_region
          _
        $region20: #{text_bert_forward.1} parent=11 // pred_fallthru
          _
        // Predicated region
        $region21: #{text_bert_forward.1} parent=11 // pred_check
          %p300 = pneg %p86
        $region22: #{text_bert_forward.1} parent=11 // pred_check_branch
          %302 = sbr.rel (%p300) target = $region24
        $region23: #{text_bert_forward.1} parent=11 // pred_region
          _
        $region24: #{text_bert_forward.1} parent=11 // pred_fallthru
          _
        // Predicated region
        $region25: #{text_bert_forward.1} parent=11 // pred_check
          %p303 = pneg %p107
        $region26: #{text_bert_forward.1} parent=11 // pred_check_branch
          %305 = sbr.rel (%p303) target = $region28
        $region27: #{text_bert_forward.1} parent=11 // pred_region
          _
        $region28: #{text_bert_forward.1} parent=11 // pred_fallthru
          _
        // Predicated region
        $region29: #{text_bert_forward.1} parent=11 // pred_check
          %p306 = pneg %p128
        $region30: #{text_bert_forward.1} parent=11 // pred_check_branch
          %308 = sbr.rel (%p306) target = $region32
        $region31: #{text_bert_forward.1} parent=11 // pred_region
          _
        $region32: #{text_bert_forward.1} parent=11 // pred_fallthru
          _
      $region12: #{text_bert_forward.1} parent=5 // pred_fallthru
        _
      %p309 = scmp.lt.s32.totalorder %s23, 2
      // Predicated region
      $region33: #{text_bert_forward.1} parent=5 // pred_check
        %p310 = pneg %p309
      $region34: #{text_bert_forward.1} parent=5 // pred_check_branch
        %312 = sbr.rel (%p310) target = $region36
      $region35: #{text_bert_forward.1} parent=5 // pred_region
        // Predicated region
        $region37: #{text_bert_forward.1} parent=35 // pred_check
          %p313 = pneg %p148
        $region38: #{text_bert_forward.1} parent=35 // pred_check_branch
          %315 = sbr.rel (%p313) target = $region40
        $region39: #{text_bert_forward.1} parent=35 // pred_region
          %s316 = sand.u32 %s138, 1
          %s317 = scalar_lea.sflag [#allocation4], %s316
          %s318 = sand.u32 %s138, 1
          %s319 = smul.addr %s318, 192
          %s320 = scalar_lea.vmem [#allocation3], %s319
          %s322 = ssub.s32 3072, 3072
          %323 = vsyncadd %s317, %s322
          %s324 = smul.addr %s23, 48
          %s325 = smul.addr %s324, 64
          %s326 = scalar_lea.hbm %s5, %s325
          %s327 = sshll.u32 %s320, 4
          %s328 = int_to_ptr.vmem [resolvable:$true] %s327
          %333 = dma.hbm_to_vmem [thread:$0]  %s326, 3072, %s328, %s317, 192, 192, 12
        $region40: #{text_bert_forward.1} parent=35 // pred_fallthru
          _
        // Predicated region
        $region41: #{text_bert_forward.1} parent=35 // pred_check
          %p334 = pneg %p174
        $region42: #{text_bert_forward.1} parent=35 // pred_check_branch
          %336 = sbr.rel (%p334) target = $region44
        $region43: #{text_bert_forward.1} parent=35 // pred_region
          %p337 = scmp.lt.s32.totalorder %s23, 1
          %s338 = scalar_select %p337, %s23, 1
          %s339 = smul.addr %s338, 16
          %s340 = smul.addr %s339, 4
          %s341 = scalar_lea.vmem %s6, %s340
        $region44: #{text_bert_forward.1} parent=35 // pred_fallthru
          _
        // Predicated region
        $region45: #{text_bert_forward.1} parent=35 // pred_check
          %p342 = pneg %p200
        $region46: #{text_bert_forward.1} parent=35 // pred_check_branch
          %344 = sbr.rel (%p342) target = $region48
        $region47: #{text_bert_forward.1} parent=35 // pred_region
          %s345 = sand.u32 %s23, 1
          %s346 = scalar_lea.sflag [#allocation7], %s345
          %s347 = sand.u32 %s190, 1
          %s348 = smul.addr %s347, 256
          %s349 = scalar_lea.vmem [#allocation6], %s348
          %s351 = ssub.s32 4096, 4096
          %352 = vsyncadd %s346, %s351
          %s353 = smul.addr %s23, 64
          %s354 = smul.addr %s353, 64
          %s355 = scalar_lea.hbm %s7, %s354
          %s356 = sshll.u32 %s349, 4
          %s357 = int_to_ptr.vmem [resolvable:$true] %s356
          %362 = dma.hbm_to_vmem [thread:$0]  %s355, 4096, %s357, %s346, 256, 256, 16
        $region48: #{text_bert_forward.1} parent=35 // pred_fallthru
          _
        // Predicated region
        $region49: #{text_bert_forward.1} parent=35 // pred_check
          %p363 = pneg %p226
        $region50: #{text_bert_forward.1} parent=35 // pred_check_branch
          %365 = sbr.rel (%p363) target = $region52
        $region51: #{text_bert_forward.1} parent=35 // pred_region
          %s366 = sand.u32 %s23, 1
          %s367 = scalar_lea.sflag [#allocation7], %s366
          %s368 = sand.u32 %s216, 1
          %s369 = smul.addr %s368, 256
          %s370 = scalar_lea.vmem [#allocation8], %s369
          %s372 = ssub.s32 4096, 4096
          %373 = vsyncadd %s367, %s372
          %s374 = smul.addr %s23, 64
          %s375 = smul.addr %s374, 64
          %s376 = scalar_lea.hbm %s8, %s375
          %s377 = sshll.u32 %s370, 4
          %s378 = int_to_ptr.vmem [resolvable:$true] %s377
          %383 = dma.hbm_to_vmem [thread:$0]  %s376, 4096, %s378, %s367, 64, 64, 4
        $region52: #{text_bert_forward.1} parent=35 // pred_fallthru
          _
        // Predicated region
        $region53: #{text_bert_forward.1} parent=35 // pred_check
          %p384 = pneg %p252
        $region54: #{text_bert_forward.1} parent=35 // pred_check_branch
          %386 = sbr.rel (%p384) target = $region56
        $region55: #{text_bert_forward.1} parent=35 // pred_region
          %p387 = scmp.lt.s32.totalorder %s23, 1
          %s388 = scalar_select %p387, %s23, 1
          %s389 = smul.addr %s388, 4
          %s390 = smul.addr %s389, 8
          %s391 = scalar_lea.vmem %s9, %s390
        $region56: #{text_bert_forward.1} parent=35 // pred_fallthru
          _
      $region36: #{text_bert_forward.1} parent=5 // pred_fallthru
        _
      %p392 = scmp.le.s32.totalorder 1, %s23
      %p393 = scmp.lt.s32.totalorder %s23, 3
      %p394 = pnand %p392, %p393
      %p395 = pneg %p394
      // Predicated region
      $region57: #{text_bert_forward.1} parent=5 // pred_check
        _
      $region58: #{text_bert_forward.1} parent=5 // pred_check_branch
        %397 = sbr.rel (%p394) target = $region60
      $region59: #{text_bert_forward.1} parent=5 // pred_region
        %s398 = ssub.s32 %s23, 1
        %s399 = sand.u32 %s141, 1
        %s400 = scalar_lea.sflag [#allocation4], %s399
        %s401 = sand.u32 %s141, 1
        %s402 = smul.addr %s401, 192
        %s403 = scalar_lea.vmem [#allocation3], %s402
        // Predicated region
        $region61: #{text_bert_forward.1} parent=59 // pred_check
          %p404 = pneg %p154
        $region62: #{text_bert_forward.1} parent=59 // pred_check_branch
          %406 = sbr.rel (%p404) target = $region64
        $region63: #{text_bert_forward.1} parent=59 // pred_region
          %407 = dma.done %s400, 3072
        $region64: #{text_bert_forward.1} parent=59 // pred_fallthru
          _
        %s408 = sand.u32 %s28, 1
        %s409 = scalar_lea.sflag [#allocation7], %s408
        %s410 = sand.u32 %s193, 1
        %s411 = smul.addr %s410, 256
        %s412 = scalar_lea.vmem [#allocation6], %s411
        // Predicated region
        $region65: #{text_bert_forward.1} parent=59 // pred_check
          %p413 = pneg %p206
        $region66: #{text_bert_forward.1} parent=59 // pred_check_branch
          %415 = sbr.rel (%p413) target = $region68
        $region67: #{text_bert_forward.1} parent=59 // pred_region
          %416 = dma.done %s409, 4096
        $region68: #{text_bert_forward.1} parent=59 // pred_fallthru
          _
        %s417 = sand.u32 %s28, 1
        %s418 = scalar_lea.sflag [#allocation7], %s417
        %s419 = sand.u32 %s219, 1
        %s420 = smul.addr %s419, 256
        %s421 = scalar_lea.vmem [#allocation8], %s420
        // Predicated region
        $region69: #{text_bert_forward.1} parent=59 // pred_check
          %p422 = pneg %p232
        $region70: #{text_bert_forward.1} parent=59 // pred_check_branch
          %424 = sbr.rel (%p422) target = $region72
        $region71: #{text_bert_forward.1} parent=59 // pred_region
          %425 = dma.done %s418, 4096
        $region72: #{text_bert_forward.1} parent=59 // pred_fallthru
          _
        %p426 = pneg %p44
        %p427 = pneg %p41
        %p428 = pneg %p65
        %p429 = pneg %p62
        %p430 = pneg %p86
        %p431 = pneg %p83
        %p432 = pneg %p107
        %p433 = pneg %p104
        %p434 = pneg %p128
        %p435 = pneg %p125
        %s436 = sand.u32 %s141, 1
        %s437 = scalar_lea.sflag [#allocation4], %s436
        %s438 = sand.u32 %s141, 1
        %s439 = smul.addr %s438, 192
        %s440 = scalar_lea.vmem [#allocation3], %s439
        %p441 = pneg %p154
        %p442 = pneg %p151
        %p443 = scmp.lt.s32.totalorder %s28, 1
        %s444 = scalar_select %p443, %s28, 1
        %s445 = smul.addr %s444, 16
        %s446 = smul.addr %s445, 4
        %s447 = scalar_lea.vmem %s6, %s446
        %p448 = pneg %p180
        %p449 = pneg %p177
        %s450 = sand.u32 %s28, 1
        %s451 = scalar_lea.sflag [#allocation7], %s450
        %s452 = sand.u32 %s193, 1
        %s453 = smul.addr %s452, 256
        %s454 = scalar_lea.vmem [#allocation6], %s453
        %p455 = pneg %p206
        %p456 = pneg %p203
        %s457 = sand.u32 %s28, 1
        %s458 = scalar_lea.sflag [#allocation7], %s457
        %s459 = sand.u32 %s219, 1
        %s460 = smul.addr %s459, 256
        %s461 = scalar_lea.vmem [#allocation8], %s460
        %p462 = pneg %p232
        %p463 = pneg %p229
        %p464 = scmp.lt.s32.totalorder %s28, 1
        %s465 = scalar_select %p464, %s28, 1
        %s466 = smul.addr %s465, 4
        %s467 = smul.addr %s466, 8
        %s468 = scalar_lea.vmem %s9, %s467
        %p469 = pneg %p258
        %p470 = pneg %p255
        %p471 = pneg %p279
        %p472 = pneg %p276
        %p473 = scmp.lt.s32.totalorder %s28, 1
        %s474 = scalar_select %p473, %s28, 1
        %s475 = smul.addr %s474, 16
        %s476 = smul.addr %s475, 4
        %s477 = scalar_lea.vmem %s6, %s476
        %p478 = scmp.lt.s32.totalorder %s28, 1
        %s479 = scalar_select %p478, %s28, 1
        %s480 = smul.addr %s479, 4
        %s481 = smul.addr %s480, 8
        %s482 = scalar_lea.vmem %s9, %s481
        %p484 = scmp.eq.s32.totalorder %s28, 0
        // Predicated region
        $region73: #{text_bert_forward.1} parent=59 // pred_check
          %p485 = pneg %p484
        $region74: #{text_bert_forward.1} parent=59 // pred_check_branch
          %487 = sbr.rel (%p485) target = $region76
        $region75: #{text_bert_forward.1} parent=59 // pred_region
          %v488 = vld [vmem:[%s0] sm:$0xff]
          %v489 = vld [vmem:[%s0 + $0x8] sm:$0xff]
          %v490 = vld [vmem:[%s2] sm:$0x1]
          %v491 = vld [vmem:[%s2 + $0x1] sm:$0x1]
          %492 = vadd.xlane.f32.xlu0 %v488
          %v493 = vpop.xlane.xlu0 %492
          %494 = vadd.xlane.f32.xlu0 %v489
          %v495 = vpop.xlane.xlu0 %494
          %v496 = vrcp.pop 128.0
          %v497 = vmul.f32 %v493, %v496
          %v498 = vmul.f32 %v495, %v496
          %v499 = vsub.f32 %v488, %v497
          %v500 = vsub.f32 %v489, %v498
          %v501 = vmul.f32 %v499, %v499
          %v502 = vmul.f32 %v500, %v500
          %503 = vadd.xlane.f32.xlu0 %v501
          %v504 = vpop.xlane.xlu0 %503
          %505 = vadd.xlane.f32.xlu0 %v502
          %v506 = vpop.xlane.xlu0 %505
          %v507 = vmul.f32 %v504, %v496
          %v508 = vmul.f32 %v506, %v496
          %v509 = vadd.f32 %v507, 1e-12
          %v510 = vadd.f32 %v508, 1e-12
          %v511 = vrsqrt.pop %v509
          %v512 = vrsqrt.pop %v510
          %v513 = vmul.f32 %v499, %v511
          %v514 = vmul.f32 %v500, %v512
          %v515 = vlaneseq
          %v516 = vshrl.u32 %v515, 7
          %v517 = vsub.s32 0, %v516
          %v518 = vrot.slane %v490, %v517
          %v519 = vmul.f32 %v513, %v518
          %v520 = vmul.f32 %v514, %v518
          %v521 = vlaneseq
          %v522 = vshrl.u32 %v521, 7
          %v523 = vsub.s32 0, %v522
          %v524 = vrot.slane %v491, %v523
          %v525 = vadd.f32 %v519, %v524
          %v526 = vadd.f32 %v520, %v524
          %527 = vst [vmem:[#allocation2] sm:$0xff] %v525
          %528 = vst [vmem:[#allocation2 + $0x8] sm:$0xff] %v526
        $region76: #{text_bert_forward.1} parent=59 // pred_fallthru
          _
        %v529 = vld [vmem:[#allocation2] sm:$0xff]
        %v530 = vld [vmem:[#allocation2 + $0x8] sm:$0xff]
        %v531 = vpack.c.bf16 %v530, %v529
        %v532 = vld [vmem:[%s482] sm:$0xff]
        %v533 = vld [vmem:[%s482 + $0x8] sm:$0xff]
        %v534 = vld [vmem:[%s482 + $0x10] sm:$0xff]
        %v535 = vld [vmem:[%s482 + $0x18] sm:$0xff]
        %v536 = vld [vmem:[%s403] sm:$0xff]
        %v537 = vld [vmem:[%s403 + $0x8] sm:$0xf]
        %v538 = vld [vmem:[%s403 + $0xc] sm:$0xff]
        %v539 = vld [vmem:[%s403 + $0x14] sm:$0xf]
        %v540 = vld [vmem:[%s403 + $0x18] sm:$0xff]
        %v541 = vld [vmem:[%s403 + $0x20] sm:$0xf]
        %v542 = vld [vmem:[%s403 + $0x24] sm:$0xff]
        %v543 = vld [vmem:[%s403 + $0x2c] sm:$0xf]
        %v544 = vld [vmem:[%s403 + $0x30] sm:$0xff]
        %v545 = vld [vmem:[%s403 + $0x38] sm:$0xf]
        %v546 = vld [vmem:[%s403 + $0x3c] sm:$0xff]
        %v547 = vld [vmem:[%s403 + $0x44] sm:$0xf]
        %v548 = vld [vmem:[%s403 + $0x48] sm:$0xff]
        %v549 = vld [vmem:[%s403 + $0x50] sm:$0xf]
        %v550 = vld [vmem:[%s403 + $0x54] sm:$0xff]
        %v551 = vld [vmem:[%s403 + $0x5c] sm:$0xf]
        %v552 = vld [vmem:[%s403 + $0x60] sm:$0xff]
        %v553 = vld [vmem:[%s403 + $0x68] sm:$0xf]
        %v554 = vld [vmem:[%s403 + $0x6c] sm:$0xff]
        %v555 = vld [vmem:[%s403 + $0x74] sm:$0xf]
        %v556 = vld [vmem:[%s403 + $0x78] sm:$0xff]
        %v557 = vld [vmem:[%s403 + $0x80] sm:$0xf]
        %v558 = vld [vmem:[%s403 + $0x84] sm:$0xff]
        %v559 = vld [vmem:[%s403 + $0x8c] sm:$0xf]
        %v560 = vld [vmem:[%s403 + $0x90] sm:$0xff]
        %v561 = vld [vmem:[%s403 + $0x98] sm:$0xf]
        %v562 = vld [vmem:[%s403 + $0x9c] sm:$0xff]
        %v563 = vld [vmem:[%s403 + $0xa4] sm:$0xf]
        %v564 = vld [vmem:[%s403 + $0xa8] sm:$0xff]
        %v565 = vld [vmem:[%s403 + $0xb0] sm:$0xf]
        %v566 = vld [vmem:[%s403 + $0xb4] sm:$0xff]
        %v567 = vld [vmem:[%s403 + $0xbc] sm:$0xf]
        %v568 = vlaneseq
        %v569 = vshrl.u32 %v568, 7
        %v570 = vsub.s32 0, %v569
        %v571 = vrot.slane %v532, %v570
        %v572 = vlaneseq
        %v573 = vshrl.u32 %v572, 7
        %v574 = vsub.s32 0, %v573
        %v575 = vrot.slane %v533, %v574
        %v576 = vlaneseq
        %v577 = vshrl.u32 %v576, 7
        %v578 = vsub.s32 0, %v577
        %v579 = vrot.slane %v534, %v578
        %v612 = vunpack.c.l.b16 %v536
        %v613 = vunpack.c.h.b16 %v536
        %v614 = vunpack.c.l.b16 %v537
        %v615 = vunpack.c.l.b16 %v538
        %v616 = vunpack.c.h.b16 %v538
        %v617 = vunpack.c.l.b16 %v539
        %v618 = vunpack.c.l.b16 %v540
        %v619 = vunpack.c.h.b16 %v540
        %v620 = vunpack.c.l.b16 %v541
        %v621 = vunpack.c.l.b16 %v542
        %v622 = vunpack.c.h.b16 %v542
        %v623 = vunpack.c.l.b16 %v543
        %v624 = vunpack.c.l.b16 %v544
        %v625 = vunpack.c.h.b16 %v544
        %v626 = vunpack.c.l.b16 %v545
        %v627 = vunpack.c.l.b16 %v546
        %v628 = vunpack.c.h.b16 %v546
        %v629 = vunpack.c.l.b16 %v547
        %v630 = vunpack.c.l.b16 %v548
        %v631 = vunpack.c.h.b16 %v548
        %v632 = vunpack.c.l.b16 %v549
        %v633 = vunpack.c.l.b16 %v550
        %v634 = vunpack.c.h.b16 %v550
        %v635 = vunpack.c.l.b16 %v551
        %v636 = vunpack.c.l.b16 %v552
        %v637 = vunpack.c.h.b16 %v552
        %v638 = vunpack.c.l.b16 %v553
        %v639 = vunpack.c.l.b16 %v554
        %v640 = vunpack.c.h.b16 %v554
        %v641 = vunpack.c.l.b16 %v555
        %v642 = vunpack.c.l.b16 %v556
        %v643 = vunpack.c.h.b16 %v556
        %v644 = vunpack.c.l.b16 %v557
        %v645 = vunpack.c.l.b16 %v558
        %v646 = vunpack.c.h.b16 %v558
        %v647 = vunpack.c.l.b16 %v559
        %v648 = vunpack.c.l.b16 %v560
        %v649 = vunpack.c.h.b16 %v560
        %v650 = vunpack.c.l.b16 %v561
        %v651 = vunpack.c.l.b16 %v562
        %v652 = vunpack.c.h.b16 %v562
        %v653 = vunpack.c.l.b16 %v563
        %v654 = vunpack.c.l.b16 %v564
        %v655 = vunpack.c.h.b16 %v564
        %v656 = vunpack.c.l.b16 %v565
        %v657 = vunpack.c.l.b16 %v566
        %v658 = vunpack.c.h.b16 %v566
        %v659 = vunpack.c.l.b16 %v567
        %v660 = vpack.c.b16 %v615, %v612
        %v661 = vpack.c.b16 %v616, %v613
        %v662 = vpack.c.b16 %v617, %v614
        %v663 = vpack.c.b16 %v621, %v618
        %v664 = vpack.c.b16 %v622, %v619
        %v665 = vpack.c.b16 %v623, %v620
        %v666 = vpack.c.b16 %v627, %v624
        %v667 = vpack.c.b16 %v628, %v625
        %v668 = vpack.c.b16 %v629, %v626
        %v669 = vpack.c.b16 %v633, %v630
        %v670 = vpack.c.b16 %v634, %v631
        %v671 = vpack.c.b16 %v635, %v632
        %v672 = vpack.c.b16 %v639, %v636
        %v673 = vpack.c.b16 %v640, %v637
        %v674 = vpack.c.b16 %v641, %v638
        %v675 = vpack.c.b16 %v645, %v642
        %v676 = vpack.c.b16 %v646, %v643
        %v677 = vpack.c.b16 %v647, %v644
        %v678 = vpack.c.b16 %v651, %v648
        %v679 = vpack.c.b16 %v652, %v649
        %v680 = vpack.c.b16 %v653, %v650
        %v681 = vpack.c.b16 %v657, %v654
        %v682 = vpack.c.b16 %v658, %v655
        %v683 = vpack.c.b16 %v659, %v656
        %708 = vmatprep.subr.bf16.mxu0 %v661
        %709 = vmatpush1.bf16.msra.mxu0 %v660
        %710 = vmatprep.subr.bf16.mxu0 %v664
        %711 = vmatpush1.bf16.msra.mxu0 %v663
        %712 = vmatprep.subr.bf16.mxu0 %v667
        %713 = vmatpush1.bf16.msra.mxu0 %v666
        %714 = vmatprep.subr.bf16.mxu0 %v670
        %715 = vmatpush1.bf16.msra.mxu0 %v669
        %716 = vmatprep.subr.bf16.mxu0 %v673
        %717 = vmatpush1.bf16.msra.mxu0 %v672
        %718 = vmatprep.subr.bf16.mxu0 %v676
        %719 = vmatpush1.bf16.msra.mxu0 %v675
        %720 = vmatprep.subr.bf16.mxu0 %v679
        %721 = vmatpush1.bf16.msra.mxu0 %v678
        %722 = vmatprep.subr.bf16.mxu0 %v682
        %723 = vmatpush1.bf16.msra.mxu0 %v681
        %724 = vmatprep.subr.bf16.mxu0 0
        %725 = vmatpush1.bf16.msra.mxu0 0
        %726 = vmatprep.subr.bf16.mxu0 0
        %727 = vmatpush1.bf16.msra.mxu0 0
        %728 = vmatprep.subr.bf16.mxu0 0
        %729 = vmatpush1.bf16.msra.mxu0 0
        %730 = vmatprep.subr.bf16.mxu0 0
        %731 = vmatpush1.bf16.msra.mxu0 0
        %732 = vmatprep.subr.bf16.mxu0 0
        %733 = vmatpush1.bf16.msra.mxu0 0
        %734 = vmatprep.subr.bf16.mxu0 0
        %735 = vmatpush1.bf16.msra.mxu0 0
        %736 = vmatprep.subr.bf16.mxu0 0
        %737 = vmatpush1.bf16.msra.mxu0 0
        %738 = vmatprep.subr.bf16.mxu0 0
        %739 = vmatpush1.bf16.msra.mxu0 0
        %740 = vmatprep.mubr.bf16.mxu0 0
        %741 = vmatmul.mubr.bf16.gmra.mrb[0].mxu0 %v531
        %v742 = vpop.f32.mrb[0].mxu0
        %v743 = vadd.f32 %v571, %v742
        %v744 = vpop.f32.mrb[0].mxu0
        %v745 = vadd.f32 %v575, %v744
        %v746 = vpop.f32.mrb[0].mxu0
        %v747 = vadd.f32 %v571, %v746
        %v748 = vpop.f32.mrb[0].mxu0
        %v749 = vadd.f32 %v575, %v748
        %750 = vdwg.mxu0
        %751 = vmatprep.subr.bf16.mxu0 0
        %752 = vmatpush1.bf16.msra.mxu0 %v662
        %753 = vmatprep.subr.bf16.mxu0 0
        %754 = vmatpush1.bf16.msra.mxu0 %v665
        %755 = vmatprep.subr.bf16.mxu0 0
        %756 = vmatpush1.bf16.msra.mxu0 %v668
        %757 = vmatprep.subr.bf16.mxu0 0
        %758 = vmatpush1.bf16.msra.mxu0 %v671
        %759 = vmatprep.subr.bf16.mxu0 0
        %760 = vmatpush1.bf16.msra.mxu0 %v674
        %761 = vmatprep.subr.bf16.mxu0 0
        %762 = vmatpush1.bf16.msra.mxu0 %v677
        %763 = vmatprep.subr.bf16.mxu0 0
        %764 = vmatpush1.bf16.msra.mxu0 %v680
        %765 = vmatprep.subr.bf16.mxu0 0
        %766 = vmatpush1.bf16.msra.mxu0 %v683
        %767 = vmatprep.subr.bf16.mxu0 0
        %768 = vmatpush1.bf16.msra.mxu0 0
        %769 = vmatprep.subr.bf16.mxu0 0
        %770 = vmatpush1.bf16.msra.mxu0 0
        %771 = vmatprep.subr.bf16.mxu0 0
        %772 = vmatpush1.bf16.msra.mxu0 0
        %773 = vmatprep.subr.bf16.mxu0 0
        %774 = vmatpush1.bf16.msra.mxu0 0
        %775 = vmatprep.subr.bf16.mxu0 0
        %776 = vmatpush1.bf16.msra.mxu0 0
        %777 = vmatprep.subr.bf16.mxu0 0
        %778 = vmatpush1.bf16.msra.mxu0 0
        %779 = vmatprep.subr.bf16.mxu0 0
        %780 = vmatpush1.bf16.msra.mxu0 0
        %781 = vmatprep.subr.bf16.mxu0 0
        %782 = vmatpush1.bf16.msra.mxu0 0
        %783 = vmatprep.mubr.bf16.mxu0 0
        %784 = vmatmul.mubr.bf16.gmra.mrb[0].mxu0 %v531
        %v785 = vpop.f32.mrb[0].mxu0
        %v786 = vadd.f32 %v579, %v785
        %v787 = vpop.f32.mrb[0].mxu0
        %v788 = vpop.f32.mrb[0].mxu0
        %v789 = vadd.f32 %v579, %v788
        %v790 = vpop.f32.mrb[0].mxu0
        %791 = vdwg.mxu0
        %794 = vrot.lane.b32.xlu0 %v743, 96
        %v795 = vpop.permute.xlu0 %794
        %796 = vrot.lane.b32.xlu0 %v747, 96
        %v797 = vpop.permute.xlu0 %796
        %800 = vrot.lane.b32.xlu0 %v743, 64
        %v801 = vpop.permute.xlu0 %800
        %802 = vrot.lane.b32.xlu0 %v747, 64
        %v803 = vpop.permute.xlu0 %802
        %806 = vrot.lane.b32.xlu0 %v743, 32
        %v807 = vpop.permute.xlu0 %806
        %808 = vrot.lane.b32.xlu0 %v747, 32
        %v809 = vpop.permute.xlu0 %808
        %v812 = vpack.c.bf16 %v747, %v743
        %v813 = vpack.c.bf16 %v797, %v795
        %v814 = vpack.c.bf16 %v803, %v801
        %v815 = vpack.c.bf16 %v809, %v807
        %818 = vrot.lane.b32.xlu0 %v745, 96
        %v819 = vpop.permute.xlu0 %818
        %820 = vrot.lane.b32.xlu0 %v749, 96
        %v821 = vpop.permute.xlu0 %820
        %824 = vrot.lane.b32.xlu0 %v745, 64
        %v825 = vpop.permute.xlu0 %824
        %826 = vrot.lane.b32.xlu0 %v749, 64
        %v827 = vpop.permute.xlu0 %826
        %830 = vrot.lane.b32.xlu0 %v745, 32
        %v831 = vpop.permute.xlu0 %830
        %832 = vrot.lane.b32.xlu0 %v749, 32
        %v833 = vpop.permute.xlu0 %832
        %v836 = vpack.c.bf16 %v749, %v745
        %v837 = vpack.c.bf16 %v821, %v819
        %v838 = vpack.c.bf16 %v827, %v825
        %v839 = vpack.c.bf16 %v833, %v831
        %842 = vrot.lane.b32.xlu0 %v786, 96
        %v843 = vpop.permute.xlu0 %842
        %844 = vrot.lane.b32.xlu0 %v789, 96
        %v845 = vpop.permute.xlu0 %844
        %848 = vrot.lane.b32.xlu0 %v786, 64
        %v849 = vpop.permute.xlu0 %848
        %850 = vrot.lane.b32.xlu0 %v789, 64
        %v851 = vpop.permute.xlu0 %850
        %854 = vrot.lane.b32.xlu0 %v786, 32
        %v855 = vpop.permute.xlu0 %854
        %856 = vrot.lane.b32.xlu0 %v789, 32
        %v857 = vpop.permute.xlu0 %856
        %v860 = vpack.c.bf16 %v789, %v786
        %v861 = vpack.c.bf16 %v845, %v843
        %v862 = vpack.c.bf16 %v851, %v849
        %v863 = vpack.c.bf16 %v857, %v855
        %v864 = vld [vmem:[%s1] sm:$0xff]
        %v865 = vld [vmem:[%s1 + $0x8] sm:$0xff]
        %vm866 = vcmask 261120
        %v868 = vsel %vm866, %v812, 0
        %v871 = vsel %vm866, %v836, 0
        %873 = vmatprep.subr.bf16.mxu0 0
        %874 = vmatpush1.bf16.xpose.msra.mxu0 %v871
        %875 = vmatprep.subr.bf16.mxu0 0
        %876 = vmatpush1.bf16.xpose.msra.mxu0 0
        %877 = vmatprep.subr.bf16.mxu0 0
        %878 = vmatpush1.bf16.xpose.msra.mxu0 0
        %879 = vmatprep.subr.bf16.mxu0 0
        %880 = vmatpush1.bf16.xpose.msra.mxu0 0
        %881 = vmatprep.subr.bf16.mxu0 0
        %882 = vmatpush1.bf16.xpose.msra.mxu0 0
        %883 = vmatprep.subr.bf16.mxu0 0
        %884 = vmatpush1.bf16.xpose.msra.mxu0 0
        %885 = vmatprep.subr.bf16.mxu0 0
        %886 = vmatpush1.bf16.xpose.msra.mxu0 0
        %887 = vmatprep.subr.bf16.mxu0 0
        %888 = vmatpush1.bf16.xpose.msra.mxu0 0
        %889 = vmatprep.subr.bf16.mxu0 0
        %890 = vmatpush1.bf16.xpose.msra.mxu0 0
        %891 = vmatprep.subr.bf16.mxu0 0
        %892 = vmatpush1.bf16.xpose.msra.mxu0 0
        %893 = vmatprep.subr.bf16.mxu0 0
        %894 = vmatpush1.bf16.xpose.msra.mxu0 0
        %895 = vmatprep.subr.bf16.mxu0 0
        %896 = vmatpush1.bf16.xpose.msra.mxu0 0
        %897 = vmatprep.subr.bf16.mxu0 0
        %898 = vmatpush1.bf16.xpose.msra.mxu0 0
        %899 = vmatprep.subr.bf16.mxu0 0
        %900 = vmatpush1.bf16.xpose.msra.mxu0 0
        %901 = vmatprep.subr.bf16.mxu0 0
        %902 = vmatpush1.bf16.xpose.msra.mxu0 0
        %903 = vmatprep.subr.bf16.mxu0 0
        %904 = vmatpush1.bf16.xpose.msra.mxu0 0
        %905 = vmatprep.mubr.bf16.mxu0 0
        %906 = vmatmul.mubr.bf16.gmra.mrb[0].mxu0 %v868
        %v907 = vpop.f32.mrb[0].mxu0
        %v908 = vadd.f32 %v864, %v907
        %v909 = vpop.f32.mrb[0].mxu0
        %v910 = vpop.f32.mrb[0].mxu0
        %v911 = vadd.f32 %v865, %v910
        %v912 = vpop.f32.mrb[0].mxu0
        %913 = vdwg.mxu0
        %v915 = vsel %vm866, %v813, 0
        %v918 = vsel %vm866, %v837, 0
        %920 = vmatprep.subr.bf16.mxu0 0
        %921 = vmatpush1.bf16.xpose.msra.mxu0 %v918
        %922 = vmatprep.subr.bf16.mxu0 0
        %923 = vmatpush1.bf16.xpose.msra.mxu0 0
        %924 = vmatprep.subr.bf16.mxu0 0
        %925 = vmatpush1.bf16.xpose.msra.mxu0 0
        %926 = vmatprep.subr.bf16.mxu0 0
        %927 = vmatpush1.bf16.xpose.msra.mxu0 0
        %928 = vmatprep.subr.bf16.mxu0 0
        %929 = vmatpush1.bf16.xpose.msra.mxu0 0
        %930 = vmatprep.subr.bf16.mxu0 0
        %931 = vmatpush1.bf16.xpose.msra.mxu0 0
        %932 = vmatprep.subr.bf16.mxu0 0
        %933 = vmatpush1.bf16.xpose.msra.mxu0 0
        %934 = vmatprep.subr.bf16.mxu0 0
        %935 = vmatpush1.bf16.xpose.msra.mxu0 0
        %936 = vmatprep.subr.bf16.mxu0 0
        %937 = vmatpush1.bf16.xpose.msra.mxu0 0
        %938 = vmatprep.subr.bf16.mxu0 0
        %939 = vmatpush1.bf16.xpose.msra.mxu0 0
        %940 = vmatprep.subr.bf16.mxu0 0
        %941 = vmatpush1.bf16.xpose.msra.mxu0 0
        %942 = vmatprep.subr.bf16.mxu0 0
        %943 = vmatpush1.bf16.xpose.msra.mxu0 0
        %944 = vmatprep.subr.bf16.mxu0 0
        %945 = vmatpush1.bf16.xpose.msra.mxu0 0
        %946 = vmatprep.subr.bf16.mxu0 0
        %947 = vmatpush1.bf16.xpose.msra.mxu0 0
        %948 = vmatprep.subr.bf16.mxu0 0
        %949 = vmatpush1.bf16.xpose.msra.mxu0 0
        %950 = vmatprep.subr.bf16.mxu0 0
        %951 = vmatpush1.bf16.xpose.msra.mxu0 0
        %952 = vmatprep.mubr.bf16.mxu0 0
        %953 = vmatmul.mubr.bf16.gmra.mrb[0].mxu0 %v915
        %v954 = vpop.f32.mrb[0].mxu0
        %v955 = vadd.f32 %v864, %v954
        %v956 = vpop.f32.mrb[0].mxu0
        %v957 = vpop.f32.mrb[0].mxu0
        %v958 = vadd.f32 %v865, %v957
        %v959 = vpop.f32.mrb[0].mxu0
        %960 = vdwg.mxu0
        %v962 = vsel %vm866, %v814, 0
        %v965 = vsel %vm866, %v838, 0
        %967 = vmatprep.subr.bf16.mxu0 0
        %968 = vmatpush1.bf16.xpose.msra.mxu0 %v965
        %969 = vmatprep.subr.bf16.mxu0 0
        %970 = vmatpush1.bf16.xpose.msra.mxu0 0
        %971 = vmatprep.subr.bf16.mxu0 0
        %972 = vmatpush1.bf16.xpose.msra.mxu0 0
        %973 = vmatprep.subr.bf16.mxu0 0
        %974 = vmatpush1.bf16.xpose.msra.mxu0 0
        %975 = vmatprep.subr.bf16.mxu0 0
        %976 = vmatpush1.bf16.xpose.msra.mxu0 0
        %977 = vmatprep.subr.bf16.mxu0 0
        %978 = vmatpush1.bf16.xpose.msra.mxu0 0
        %979 = vmatprep.subr.bf16.mxu0 0
        %980 = vmatpush1.bf16.xpose.msra.mxu0 0
        %981 = vmatprep.subr.bf16.mxu0 0
        %982 = vmatpush1.bf16.xpose.msra.mxu0 0
        %983 = vmatprep.subr.bf16.mxu0 0
        %984 = vmatpush1.bf16.xpose.msra.mxu0 0
        %985 = vmatprep.subr.bf16.mxu0 0
        %986 = vmatpush1.bf16.xpose.msra.mxu0 0
        %987 = vmatprep.subr.bf16.mxu0 0
        %988 = vmatpush1.bf16.xpose.msra.mxu0 0
        %989 = vmatprep.subr.bf16.mxu0 0
        %990 = vmatpush1.bf16.xpose.msra.mxu0 0
        %991 = vmatprep.subr.bf16.mxu0 0
        %992 = vmatpush1.bf16.xpose.msra.mxu0 0
        %993 = vmatprep.subr.bf16.mxu0 0
        %994 = vmatpush1.bf16.xpose.msra.mxu0 0
        %995 = vmatprep.subr.bf16.mxu0 0
        %996 = vmatpush1.bf16.xpose.msra.mxu0 0
        %997 = vmatprep.subr.bf16.mxu0 0
        %998 = vmatpush1.bf16.xpose.msra.mxu0 0
        %999 = vmatprep.mubr.bf16.mxu0 0
        %1000 = vmatmul.mubr.bf16.gmra.mrb[0].mxu0 %v962
        %v1001 = vpop.f32.mrb[0].mxu0
        %v1002 = vadd.f32 %v864, %v1001
        %v1003 = vpop.f32.mrb[0].mxu0
        %v1004 = vpop.f32.mrb[0].mxu0
        %v1005 = vadd.f32 %v865, %v1004
        %v1006 = vpop.f32.mrb[0].mxu0
        %1007 = vdwg.mxu0
        %v1009 = vsel %vm866, %v815, 0
        %v1012 = vsel %vm866, %v839, 0
        %1014 = vmatprep.subr.bf16.mxu0 0
        %1015 = vmatpush1.bf16.xpose.msra.mxu0 %v1012
        %1016 = vmatprep.subr.bf16.mxu0 0
        %1017 = vmatpush1.bf16.xpose.msra.mxu0 0
        %1018 = vmatprep.subr.bf16.mxu0 0
        %1019 = vmatpush1.bf16.xpose.msra.mxu0 0
        %1020 = vmatprep.subr.bf16.mxu0 0
        %1021 = vmatpush1.bf16.xpose.msra.mxu0 0
        %1022 = vmatprep.subr.bf16.mxu0 0
        %1023 = vmatpush1.bf16.xpose.msra.mxu0 0
        %1024 = vmatprep.subr.bf16.mxu0 0
        %1025 = vmatpush1.bf16.xpose.msra.mxu0 0
        %1026 = vmatprep.subr.bf16.mxu0 0
        %1027 = vmatpush1.bf16.xpose.msra.mxu0 0
        %1028 = vmatprep.subr.bf16.mxu0 0
        %1029 = vmatpush1.bf16.xpose.msra.mxu0 0
        %1030 = vmatprep.subr.bf16.mxu0 0
        %1031 = vmatpush1.bf16.xpose.msra.mxu0 0
        %1032 = vmatprep.subr.bf16.mxu0 0
        %1033 = vmatpush1.bf16.xpose.msra.mxu0 0
        %1034 = vmatprep.subr.bf16.mxu0 0
        %1035 = vmatpush1.bf16.xpose.msra.mxu0 0
        %1036 = vmatprep.subr.bf16.mxu0 0
        %1037 = vmatpush1.bf16.xpose.msra.mxu0 0
        %1038 = vmatprep.subr.bf16.mxu0 0
        %1039 = vmatpush1.bf16.xpose.msra.mxu0 0
        %1040 = vmatprep.subr.bf16.mxu0 0
        %1041 = vmatpush1.bf16.xpose.msra.mxu0 0
        %1042 = vmatprep.subr.bf16.mxu0 0
        %1043 = vmatpush1.bf16.xpose.msra.mxu0 0
        %1044 = vmatprep.subr.bf16.mxu0 0
        %1045 = vmatpush1.bf16.xpose.msra.mxu0 0
        %1046 = vmatprep.mubr.bf16.mxu0 0
        %1047 = vmatmul.mubr.bf16.gmra.mrb[0].mxu0 %v1009
        %v1048 = vpop.f32.mrb[0].mxu0
        %v1049 = vadd.f32 %v864, %v1048
        %v1050 = vpop.f32.mrb[0].mxu0
        %v1051 = vpop.f32.mrb[0].mxu0
        %v1052 = vadd.f32 %v865, %v1051
        %v1053 = vpop.f32.mrb[0].mxu0
        %1054 = vdwg.mxu0
        %vm1055 = vcmask 130048
        %v1056 = vsel %vm1055, %v908, -inf
        %1057 = vmax.xlane.f32.xlu0 %v1056
        %v1058 = vpop.xlane.xlu0 %1057
        %v1059 = vsel %vm1055, %v911, -inf
        %1060 = vmax.xlane.f32.xlu0 %v1059
        %v1061 = vpop.xlane.xlu0 %1060
        %v1062 = vsel %vm1055, %v955, -inf
        %1063 = vmax.xlane.f32.xlu0 %v1062
        %v1064 = vpop.xlane.xlu0 %1063
        %v1065 = vsel %vm1055, %v958, -inf
        %1066 = vmax.xlane.f32.xlu0 %v1065
        %v1067 = vpop.xlane.xlu0 %1066
        %v1068 = vsel %vm1055, %v1002, -inf
        %1069 = vmax.xlane.f32.xlu0 %v1068
        %v1070 = vpop.xlane.xlu0 %1069
        %v1071 = vsel %vm1055, %v1005, -inf
        %1072 = vmax.xlane.f32.xlu0 %v1071
        %v1073 = vpop.xlane.xlu0 %1072
        %v1074 = vsel %vm1055, %v1049, -inf
        %1075 = vmax.xlane.f32.xlu0 %v1074
        %v1076 = vpop.xlane.xlu0 %1075
        %v1077 = vsel %vm1055, %v1052, -inf
        %1078 = vmax.xlane.f32.xlu0 %v1077
        %v1079 = vpop.xlane.xlu0 %1078
        %v1080 = vsub.f32 %v908, %v1058
        %v1081 = vsub.f32 %v911, %v1061
        %v1082 = vsub.f32 %v955, %v1064
        %v1083 = vsub.f32 %v958, %v1067
        %v1084 = vsub.f32 %v1002, %v1070
        %v1085 = vsub.f32 %v1005, %v1073
        %v1086 = vsub.f32 %v1049, %v1076
        %v1087 = vsub.f32 %v1052, %v1079
        %v1088 = vmul.f32 %v1080, 1.442695
        %v1089 = vpow.pop %v1088
        %v1090 = vmul.f32 %v1081, 1.442695
        %v1091 = vpow.pop %v1090
        %v1092 = vmul.f32 %v1082, 1.442695
        %v1093 = vpow.pop %v1092
        %v1094 = vmul.f32 %v1083, 1.442695
        %v1095 = vpow.pop %v1094
        %v1096 = vmul.f32 %v1084, 1.442695
        %v1097 = vpow.pop %v1096
        %v1098 = vmul.f32 %v1085, 1.442695
        %v1099 = vpow.pop %v1098
        %v1100 = vmul.f32 %v1086, 1.442695
        %v1101 = vpow.pop %v1100
        %v1102 = vmul.f32 %v1087, 1.442695
        %v1103 = vpow.pop %v1102
        %v1104 = vsel %vm1055, %v1089, 0.0
        %1105 = vadd.xlane.f32.xlu0 %v1104
        %v1106 = vpop.xlane.xlu0 %1105
        %v1107 = vsel %vm1055, %v1091, 0.0
        %1108 = vadd.xlane.f32.xlu0 %v1107
        %v1109 = vpop.xlane.xlu0 %1108
        %v1110 = vsel %vm1055, %v1093, 0.0
        %1111 = vadd.xlane.f32.xlu0 %v1110
        %v1112 = vpop.xlane.xlu0 %1111
        %v1113 = vsel %vm1055, %v1095, 0.0
        %1114 = vadd.xlane.f32.xlu0 %v1113
        %v1115 = vpop.xlane.xlu0 %1114
        %v1116 = vsel %vm1055, %v1097, 0.0
        %1117 = vadd.xlane.f32.xlu0 %v1116
        %v1118 = vpop.xlane.xlu0 %1117
        %v1119 = vsel %vm1055, %v1099, 0.0
        %1120 = vadd.xlane.f32.xlu0 %v1119
        %v1121 = vpop.xlane.xlu0 %1120
        %v1122 = vsel %vm1055, %v1101, 0.0
        %1123 = vadd.xlane.f32.xlu0 %v1122
        %v1124 = vpop.xlane.xlu0 %1123
        %v1125 = vsel %vm1055, %v1103, 0.0
        %1126 = vadd.xlane.f32.xlu0 %v1125
        %v1127 = vpop.xlane.xlu0 %1126
        %v1128 = vrcp.pop %v1106
        %v1129 = vrcp.pop %v1109
        %v1130 = vrcp.pop %v1112
        %v1131 = vrcp.pop %v1115
        %v1132 = vrcp.pop %v1118
        %v1133 = vrcp.pop %v1121
        %v1134 = vrcp.pop %v1124
        %v1135 = vrcp.pop %v1127
        %v1136 = vmul.f32 %v1089, %v1128
        %v1137 = vmul.f32 %v1091, %v1129
        %v1138 = vmul.f32 %v1093, %v1130
        %v1139 = vmul.f32 %v1095, %v1131
        %v1140 = vmul.f32 %v1097, %v1132
        %v1141 = vmul.f32 %v1099, %v1133
        %v1142 = vmul.f32 %v1101, %v1134
        %v1143 = vmul.f32 %v1103, %v1135
        %v1144 = vpack.c.bf16 %v1137, %v1136
        %v1145 = vpack.c.bf16 %v1139, %v1138
        %v1146 = vpack.c.bf16 %v1141, %v1140
        %v1147 = vpack.c.bf16 %v1143, %v1142
        %v1149 = vsel %vm1055, %v1144, 0
        %1151 = vmatprep.subr.bf16.mxu0 0
        %1152 = vmatpush1.bf16.msra.mxu0 %v860
        %1153 = vmatprep.subr.bf16.mxu0 0
        %1154 = vmatpush1.bf16.msra.mxu0 0
        %1155 = vmatprep.subr.bf16.mxu0 0
        %1156 = vmatpush1.bf16.msra.mxu0 0
        %1157 = vmatprep.subr.bf16.mxu0 0
        %1158 = vmatpush1.bf16.msra.mxu0 0
        %1159 = vmatprep.subr.bf16.mxu0 0
        %1160 = vmatpush1.bf16.msra.mxu0 0
        %1161 = vmatprep.subr.bf16.mxu0 0
        %1162 = vmatpush1.bf16.msra.mxu0 0
        %1163 = vmatprep.subr.bf16.mxu0 0
        %1164 = vmatpush1.bf16.msra.mxu0 0
        %1165 = vmatprep.subr.bf16.mxu0 0
        %1166 = vmatpush1.bf16.msra.mxu0 0
        %1167 = vmatprep.subr.bf16.mxu0 0
        %1168 = vmatpush1.bf16.msra.mxu0 0
        %1169 = vmatprep.subr.bf16.mxu0 0
        %1170 = vmatpush1.bf16.msra.mxu0 0
        %1171 = vmatprep.subr.bf16.mxu0 0
        %1172 = vmatpush1.bf16.msra.mxu0 0
        %1173 = vmatprep.subr.bf16.mxu0 0
        %1174 = vmatpush1.bf16.msra.mxu0 0
        %1175 = vmatprep.subr.bf16.mxu0 0
        %1176 = vmatpush1.bf16.msra.mxu0 0
        %1177 = vmatprep.subr.bf16.mxu0 0
        %1178 = vmatpush1.bf16.msra.mxu0 0
        %1179 = vmatprep.subr.bf16.mxu0 0
        %1180 = vmatpush1.bf16.msra.mxu0 0
        %1181 = vmatprep.subr.bf16.mxu0 0
        %1182 = vmatpush1.bf16.msra.mxu0 0
        %1183 = vmatprep.mubr.bf16.mxu0 0
        %1184 = vmatmul.mubr.bf16.gmra.mrb[0].mxu0 %v1149
        %v1185 = vpop.f32.mrb[0].mxu0
        %v1186 = vadd.f32 0.0, %v1185
        %v1187 = vpop.f32.mrb[0].mxu0
        %v1188 = vpop.f32.mrb[0].mxu0
        %v1189 = vadd.f32 0.0, %v1188
        %v1190 = vpop.f32.mrb[0].mxu0
        %1191 = vdwg.mxu0
        %v1193 = vsel %vm1055, %v1145, 0
        %1195 = vmatprep.subr.bf16.mxu0 0
        %1196 = vmatpush1.bf16.msra.mxu0 %v861
        %1197 = vmatprep.subr.bf16.mxu0 0
        %1198 = vmatpush1.bf16.msra.mxu0 0
        %1199 = vmatprep.subr.bf16.mxu0 0
        %1200 = vmatpush1.bf16.msra.mxu0 0
        %1201 = vmatprep.subr.bf16.mxu0 0
        %1202 = vmatpush1.bf16.msra.mxu0 0
        %1203 = vmatprep.subr.bf16.mxu0 0
        %1204 = vmatpush1.bf16.msra.mxu0 0
        %1205 = vmatprep.subr.bf16.mxu0 0
        %1206 = vmatpush1.bf16.msra.mxu0 0
        %1207 = vmatprep.subr.bf16.mxu0 0
        %1208 = vmatpush1.bf16.msra.mxu0 0
        %1209 = vmatprep.subr.bf16.mxu0 0
        %1210 = vmatpush1.bf16.msra.mxu0 0
        %1211 = vmatprep.subr.bf16.mxu0 0
        %1212 = vmatpush1.bf16.msra.mxu0 0
        %1213 = vmatprep.subr.bf16.mxu0 0
        %1214 = vmatpush1.bf16.msra.mxu0 0
        %1215 = vmatprep.subr.bf16.mxu0 0
        %1216 = vmatpush1.bf16.msra.mxu0 0
        %1217 = vmatprep.subr.bf16.mxu0 0
        %1218 = vmatpush1.bf16.msra.mxu0 0
        %1219 = vmatprep.subr.bf16.mxu0 0
        %1220 = vmatpush1.bf16.msra.mxu0 0
        %1221 = vmatprep.subr.bf16.mxu0 0
        %1222 = vmatpush1.bf16.msra.mxu0 0
        %1223 = vmatprep.subr.bf16.mxu0 0
        %1224 = vmatpush1.bf16.msra.mxu0 0
        %1225 = vmatprep.subr.bf16.mxu0 0
        %1226 = vmatpush1.bf16.msra.mxu0 0
        %1227 = vmatprep.mubr.bf16.mxu0 0
        %1228 = vmatmul.mubr.bf16.gmra.mrb[0].mxu0 %v1193
        %v1229 = vpop.f32.mrb[0].mxu0
        %v1230 = vadd.f32 0.0, %v1229
        %v1231 = vpop.f32.mrb[0].mxu0
        %v1232 = vpop.f32.mrb[0].mxu0
        %v1233 = vadd.f32 0.0, %v1232
        %v1234 = vpop.f32.mrb[0].mxu0
        %1235 = vdwg.mxu0
        %v1237 = vsel %vm1055, %v1146, 0
        %1239 = vmatprep.subr.bf16.mxu0 0
        %1240 = vmatpush1.bf16.msra.mxu0 %v862
        %1241 = vmatprep.subr.bf16.mxu0 0
        %1242 = vmatpush1.bf16.msra.mxu0 0
        %1243 = vmatprep.subr.bf16.mxu0 0
        %1244 = vmatpush1.bf16.msra.mxu0 0
        %1245 = vmatprep.subr.bf16.mxu0 0
        %1246 = vmatpush1.bf16.msra.mxu0 0
        %1247 = vmatprep.subr.bf16.mxu0 0
        %1248 = vmatpush1.bf16.msra.mxu0 0
        %1249 = vmatprep.subr.bf16.mxu0 0
        %1250 = vmatpush1.bf16.msra.mxu0 0
        %1251 = vmatprep.subr.bf16.mxu0 0
        %1252 = vmatpush1.bf16.msra.mxu0 0
        %1253 = vmatprep.subr.bf16.mxu0 0
        %1254 = vmatpush1.bf16.msra.mxu0 0
        %1255 = vmatprep.subr.bf16.mxu0 0
        %1256 = vmatpush1.bf16.msra.mxu0 0
        %1257 = vmatprep.subr.bf16.mxu0 0
        %1258 = vmatpush1.bf16.msra.mxu0 0
        %1259 = vmatprep.subr.bf16.mxu0 0
        %1260 = vmatpush1.bf16.msra.mxu0 0
        %1261 = vmatprep.subr.bf16.mxu0 0
        %1262 = vmatpush1.bf16.msra.mxu0 0
        %1263 = vmatprep.subr.bf16.mxu0 0
        %1264 = vmatpush1.bf16.msra.mxu0 0
        %1265 = vmatprep.subr.bf16.mxu0 0
        %1266 = vmatpush1.bf16.msra.mxu0 0
        %1267 = vmatprep.subr.bf16.mxu0 0
        %1268 = vmatpush1.bf16.msra.mxu0 0
        %1269 = vmatprep.subr.bf16.mxu0 0
        %1270 = vmatpush1.bf16.msra.mxu0 0
        %1271 = vmatprep.mubr.bf16.mxu0 0
        %1272 = vmatmul.mubr.bf16.gmra.mrb[0].mxu0 %v1237
        %v1273 = vpop.f32.mrb[0].mxu0
        %v1274 = vadd.f32 0.0, %v1273
        %v1275 = vpop.f32.mrb[0].mxu0
        %v1276 = vpop.f32.mrb[0].mxu0
        %v1277 = vadd.f32 0.0, %v1276
        %v1278 = vpop.f32.mrb[0].mxu0
        %1279 = vdwg.mxu0
        %v1281 = vsel %vm1055, %v1147, 0
        %1283 = vmatprep.subr.bf16.mxu0 0
        %1284 = vmatpush1.bf16.msra.mxu0 %v863
        %1285 = vmatprep.subr.bf16.mxu0 0
        %1286 = vmatpush1.bf16.msra.mxu0 0
        %1287 = vmatprep.subr.bf16.mxu0 0
        %1288 = vmatpush1.bf16.msra.mxu0 0
        %1289 = vmatprep.subr.bf16.mxu0 0
        %1290 = vmatpush1.bf16.msra.mxu0 0
        %1291 = vmatprep.subr.bf16.mxu0 0
        %1292 = vmatpush1.bf16.msra.mxu0 0
        %1293 = vmatprep.subr.bf16.mxu0 0
        %1294 = vmatpush1.bf16.msra.mxu0 0
        %1295 = vmatprep.subr.bf16.mxu0 0
        %1296 = vmatpush1.bf16.msra.mxu0 0
        %1297 = vmatprep.subr.bf16.mxu0 0
        %1298 = vmatpush1.bf16.msra.mxu0 0
        %1299 = vmatprep.subr.bf16.mxu0 0
        %1300 = vmatpush1.bf16.msra.mxu0 0
        %1301 = vmatprep.subr.bf16.mxu0 0
        %1302 = vmatpush1.bf16.msra.mxu0 0
        %1303 = vmatprep.subr.bf16.mxu0 0
        %1304 = vmatpush1.bf16.msra.mxu0 0
        %1305 = vmatprep.subr.bf16.mxu0 0
        %1306 = vmatpush1.bf16.msra.mxu0 0
        %1307 = vmatprep.subr.bf16.mxu0 0
        %1308 = vmatpush1.bf16.msra.mxu0 0
        %1309 = vmatprep.subr.bf16.mxu0 0
        %1310 = vmatpush1.bf16.msra.mxu0 0
        %1311 = vmatprep.subr.bf16.mxu0 0
        %1312 = vmatpush1.bf16.msra.mxu0 0
        %1313 = vmatprep.subr.bf16.mxu0 0
        %1314 = vmatpush1.bf16.msra.mxu0 0
        %1315 = vmatprep.mubr.bf16.mxu0 0
        %1316 = vmatmul.mubr.bf16.gmra.mrb[0].mxu0 %v1281
        %v1317 = vpop.f32.mrb[0].mxu0
        %v1318 = vadd.f32 0.0, %v1317
        %v1319 = vpop.f32.mrb[0].mxu0
        %v1320 = vpop.f32.mrb[0].mxu0
        %v1321 = vadd.f32 0.0, %v1320
        %v1322 = vpop.f32.mrb[0].mxu0
        %1323 = vdwg.mxu0
        %1326 = vrot.lane.b32.xlu0 %v1230, 32
        %v1327 = vpop.permute.xlu0 %1326
        %1328 = vrot.lane.b32.xlu0 %v1233, 32
        %v1329 = vpop.permute.xlu0 %1328
        %1334 = vrot.lane.b32.xlu0 %v1274, 64
        %v1335 = vpop.permute.xlu0 %1334
        %1336 = vrot.lane.b32.xlu0 %v1277, 64
        %v1337 = vpop.permute.xlu0 %1336
        %1342 = vrot.lane.b32.xlu0 %v1318, 96
        %v1343 = vpop.permute.xlu0 %1342
        %1344 = vrot.lane.b32.xlu0 %v1321, 96
        %v1345 = vpop.permute.xlu0 %1344
        %v1348 = vsel %vm866, %v1186, %v1327
        %v1349 = vsel %vm866, %v1189, %v1329
        %vm1350 = vcmask 523264
        %v1351 = vsel %vm1350, %v1348, %v1335
        %v1352 = vsel %vm1350, %v1349, %v1337
        %vm1353 = vcmask 785408
        %v1354 = vsel %vm1353, %v1351, %v1343
        %v1355 = vsel %vm1353, %v1352, %v1345
        %v1356 = vpack.c.bf16 %v1355, %v1354
        %v1357 = vld [vmem:[%s477] sm:$0xf]
        %v1358 = vld [vmem:[%s477 + $0x4] sm:$0xf]
        %v1359 = vld [vmem:[%s477 + $0x8] sm:$0xf]
        %v1360 = vld [vmem:[%s477 + $0xc] sm:$0xf]
        %v1361 = vld [vmem:[%s477 + $0x10] sm:$0xf]
        %v1362 = vld [vmem:[%s477 + $0x14] sm:$0xf]
        %v1363 = vld [vmem:[%s477 + $0x18] sm:$0xf]
        %v1364 = vld [vmem:[%s477 + $0x1c] sm:$0xf]
        %v1365 = vld [vmem:[%s477 + $0x20] sm:$0xf]
        %v1366 = vld [vmem:[%s477 + $0x24] sm:$0xf]
        %v1367 = vld [vmem:[%s477 + $0x28] sm:$0xf]
        %v1368 = vld [vmem:[%s477 + $0x2c] sm:$0xf]
        %v1369 = vld [vmem:[%s477 + $0x30] sm:$0xf]
        %v1370 = vld [vmem:[%s477 + $0x34] sm:$0xf]
        %v1371 = vld [vmem:[%s477 + $0x38] sm:$0xf]
        %v1372 = vld [vmem:[%s477 + $0x3c] sm:$0xf]
        %v1373 = vlaneseq
        %v1374 = vshrl.u32 %v1373, 7
        %v1375 = vsub.s32 1, %v1374
        %v1376 = vrot.slane %v532, %v1375
        %v1393 = vunpack.c.l.b16 %v1357
        %v1394 = vunpack.c.l.b16 %v1358
        %v1395 = vunpack.c.l.b16 %v1359
        %v1396 = vunpack.c.l.b16 %v1360
        %v1397 = vunpack.c.l.b16 %v1361
        %v1398 = vunpack.c.l.b16 %v1362
        %v1399 = vunpack.c.l.b16 %v1363
        %v1400 = vunpack.c.l.b16 %v1364
        %v1401 = vunpack.c.l.b16 %v1365
        %v1402 = vunpack.c.l.b16 %v1366
        %v1403 = vunpack.c.l.b16 %v1367
        %v1404 = vunpack.c.l.b16 %v1368
        %v1405 = vunpack.c.l.b16 %v1369
        %v1406 = vunpack.c.l.b16 %v1370
        %v1407 = vunpack.c.l.b16 %v1371
        %v1408 = vunpack.c.l.b16 %v1372
        %v1409 = vpack.c.b16 %v1394, %v1393
        %v1410 = vpack.c.b16 %v1396, %v1395
        %v1411 = vpack.c.b16 %v1398, %v1397
        %v1412 = vpack.c.b16 %v1400, %v1399
        %v1413 = vpack.c.b16 %v1402, %v1401
        %v1414 = vpack.c.b16 %v1404, %v1403
        %v1415 = vpack.c.b16 %v1406, %v1405
        %v1416 = vpack.c.b16 %v1408, %v1407
        %1425 = vmatprep.subr.bf16.mxu0 0
        %1426 = vmatpush1.bf16.msra.mxu0 %v1409
        %1427 = vmatprep.subr.bf16.mxu0 0
        %1428 = vmatpush1.bf16.msra.mxu0 %v1410
        %1429 = vmatprep.subr.bf16.mxu0 0
        %1430 = vmatpush1.bf16.msra.mxu0 %v1411
        %1431 = vmatprep.subr.bf16.mxu0 0
        %1432 = vmatpush1.bf16.msra.mxu0 %v1412
        %1433 = vmatprep.subr.bf16.mxu0 0
        %1434 = vmatpush1.bf16.msra.mxu0 %v1413
        %1435 = vmatprep.subr.bf16.mxu0 0
        %1436 = vmatpush1.bf16.msra.mxu0 %v1414
        %1437 = vmatprep.subr.bf16.mxu0 0
        %1438 = vmatpush1.bf16.msra.mxu0 %v1415
        %1439 = vmatprep.subr.bf16.mxu0 0
        %1440 = vmatpush1.bf16.msra.mxu0 %v1416
        %1441 = vmatprep.subr.bf16.mxu0 0
        %1442 = vmatpush1.bf16.msra.mxu0 0
        %1443 = vmatprep.subr.bf16.mxu0 0
        %1444 = vmatpush1.bf16.msra.mxu0 0
        %1445 = vmatprep.subr.bf16.mxu0 0
        %1446 = vmatpush1.bf16.msra.mxu0 0
        %1447 = vmatprep.subr.bf16.mxu0 0
        %1448 = vmatpush1.bf16.msra.mxu0 0
        %1449 = vmatprep.subr.bf16.mxu0 0
        %1450 = vmatpush1.bf16.msra.mxu0 0
        %1451 = vmatprep.subr.bf16.mxu0 0
        %1452 = vmatpush1.bf16.msra.mxu0 0
        %1453 = vmatprep.subr.bf16.mxu0 0
        %1454 = vmatpush1.bf16.msra.mxu0 0
        %1455 = vmatprep.subr.bf16.mxu0 0
        %1456 = vmatpush1.bf16.msra.mxu0 0
        %1457 = vmatprep.mubr.bf16.mxu0 0
        %1458 = vmatmul.mubr.bf16.gmra.mrb[0].mxu0 %v1356
        %v1459 = vpop.f32.mrb[0].mxu0
        %v1460 = vadd.f32 %v1376, %v1459
        %v1461 = vpop.f32.mrb[0].mxu0
        %v1462 = vpop.f32.mrb[0].mxu0
        %v1463 = vadd.f32 %v1376, %v1462
        %v1464 = vpop.f32.mrb[0].mxu0
        %1465 = vdwg.mxu0
        %v1466 = vadd.f32 %v1460, %v529
        %v1467 = vadd.f32 %v1463, %v530
        %1468 = vadd.xlane.f32.xlu0 %v1466
        %v1469 = vpop.xlane.xlu0 %1468
        %1470 = vadd.xlane.f32.xlu0 %v1467
        %v1471 = vpop.xlane.xlu0 %1470
        %v1472 = vrcp.pop 128.0
        %v1473 = vmul.f32 %v1469, %v1472
        %v1474 = vmul.f32 %v1471, %v1472
        %v1475 = vsub.f32 %v1466, %v1473
        %v1476 = vsub.f32 %v1467, %v1474
        %v1477 = vmul.f32 %v1475, %v1475
        %v1478 = vmul.f32 %v1476, %v1476
        %1479 = vadd.xlane.f32.xlu0 %v1477
        %v1480 = vpop.xlane.xlu0 %1479
        %1481 = vadd.xlane.f32.xlu0 %v1478
        %v1482 = vpop.xlane.xlu0 %1481
        %v1483 = vmul.f32 %v1480, %v1472
        %v1484 = vmul.f32 %v1482, %v1472
        %v1485 = vadd.f32 %v1483, 1e-12
        %v1486 = vadd.f32 %v1484, 1e-12
        %v1487 = vrsqrt.pop %v1485
        %v1488 = vrsqrt.pop %v1486
        %v1489 = vmul.f32 %v1475, %v1487
        %v1490 = vmul.f32 %v1476, %v1488
        %v1491 = vlaneseq
        %v1492 = vshrl.u32 %v1491, 7
        %v1493 = vsub.s32 2, %v1492
        %v1494 = vrot.slane %v532, %v1493
        %v1495 = vmul.f32 %v1489, %v1494
        %v1496 = vmul.f32 %v1490, %v1494
        %v1497 = vlaneseq
        %v1498 = vshrl.u32 %v1497, 7
        %v1499 = vsub.s32 3, %v1498
        %v1500 = vrot.slane %v532, %v1499
        %v1501 = vadd.f32 %v1495, %v1500
        %v1502 = vadd.f32 %v1496, %v1500
        %v1503 = vpack.c.bf16 %v1502, %v1501
        %v1504 = vld [vmem:[%s412] sm:$0xff]
        %v1505 = vld [vmem:[%s412 + $0x8] sm:$0xff]
        %v1506 = vld [vmem:[%s412 + $0x10] sm:$0xff]
        %v1507 = vld [vmem:[%s412 + $0x18] sm:$0xff]
        %v1508 = vld [vmem:[%s412 + $0x20] sm:$0xff]
        %v1509 = vld [vmem:[%s412 + $0x28] sm:$0xff]
        %v1510 = vld [vmem:[%s412 + $0x30] sm:$0xff]
        %v1511 = vld [vmem:[%s412 + $0x38] sm:$0xff]
        %v1512 = vld [vmem:[%s412 + $0x40] sm:$0xff]
        %v1513 = vld [vmem:[%s412 + $0x48] sm:$0xff]
        %v1514 = vld [vmem:[%s412 + $0x50] sm:$0xff]
        %v1515 = vld [vmem:[%s412 + $0x58] sm:$0xff]
        %v1516 = vld [vmem:[%s412 + $0x60] sm:$0xff]
        %v1517 = vld [vmem:[%s412 + $0x68] sm:$0xff]
        %v1518 = vld [vmem:[%s412 + $0x70] sm:$0xff]
        %v1519 = vld [vmem:[%s412 + $0x78] sm:$0xff]
        %v1520 = vld [vmem:[%s412 + $0x80] sm:$0xff]
        %v1521 = vld [vmem:[%s412 + $0x88] sm:$0xff]
        %v1522 = vld [vmem:[%s412 + $0x90] sm:$0xff]
        %v1523 = vld [vmem:[%s412 + $0x98] sm:$0xff]
        %v1524 = vld [vmem:[%s412 + $0xa0] sm:$0xff]
        %v1525 = vld [vmem:[%s412 + $0xa8] sm:$0xff]
        %v1526 = vld [vmem:[%s412 + $0xb0] sm:$0xff]
        %v1527 = vld [vmem:[%s412 + $0xb8] sm:$0xff]
        %v1528 = vld [vmem:[%s412 + $0xc0] sm:$0xff]
        %v1529 = vld [vmem:[%s412 + $0xc8] sm:$0xff]
        %v1530 = vld [vmem:[%s412 + $0xd0] sm:$0xff]
        %v1531 = vld [vmem:[%s412 + $0xd8] sm:$0xff]
        %v1532 = vld [vmem:[%s412 + $0xe0] sm:$0xff]
        %v1533 = vld [vmem:[%s412 + $0xe8] sm:$0xff]
        %v1534 = vld [vmem:[%s412 + $0xf0] sm:$0xff]
        %v1535 = vld [vmem:[%s412 + $0xf8] sm:$0xff]
        %v1536 = vlaneseq
        %v1537 = vshrl.u32 %v1536, 7
        %v1538 = vsub.s32 4, %v1537
        %v1539 = vrot.slane %v532, %v1538
        %v1540 = vlaneseq
        %v1541 = vshrl.u32 %v1540, 7
        %v1542 = vsub.s32 4, %v1541
        %v1543 = vrot.slane %v533, %v1542
        %v1544 = vlaneseq
        %v1545 = vshrl.u32 %v1544, 7
        %v1546 = vsub.s32 4, %v1545
        %v1547 = vrot.slane %v534, %v1546
        %v1548 = vlaneseq
        %v1549 = vshrl.u32 %v1548, 7
        %v1550 = vsub.s32 4, %v1549
        %v1551 = vrot.slane %v535, %v1550
        %v1584 = vunpack.c.l.b16 %v1504
        %v1585 = vunpack.c.h.b16 %v1504
        %v1586 = vunpack.c.l.b16 %v1505
        %v1587 = vunpack.c.h.b16 %v1505
        %v1588 = vunpack.c.l.b16 %v1506
        %v1589 = vunpack.c.h.b16 %v1506
        %v1590 = vunpack.c.l.b16 %v1507
        %v1591 = vunpack.c.h.b16 %v1507
        %v1592 = vunpack.c.l.b16 %v1508
        %v1593 = vunpack.c.h.b16 %v1508
        %v1594 = vunpack.c.l.b16 %v1509
        %v1595 = vunpack.c.h.b16 %v1509
        %v1596 = vunpack.c.l.b16 %v1510
        %v1597 = vunpack.c.h.b16 %v1510
        %v1598 = vunpack.c.l.b16 %v1511
        %v1599 = vunpack.c.h.b16 %v1511
        %v1600 = vunpack.c.l.b16 %v1512
        %v1601 = vunpack.c.h.b16 %v1512
        %v1602 = vunpack.c.l.b16 %v1513
        %v1603 = vunpack.c.h.b16 %v1513
        %v1604 = vunpack.c.l.b16 %v1514
        %v1605 = vunpack.c.h.b16 %v1514
        %v1606 = vunpack.c.l.b16 %v1515
        %v1607 = vunpack.c.h.b16 %v1515
        %v1608 = vunpack.c.l.b16 %v1516
        %v1609 = vunpack.c.h.b16 %v1516
        %v1610 = vunpack.c.l.b16 %v1517
        %v1611 = vunpack.c.h.b16 %v1517
        %v1612 = vunpack.c.l.b16 %v1518
        %v1613 = vunpack.c.h.b16 %v1518
        %v1614 = vunpack.c.l.b16 %v1519
        %v1615 = vunpack.c.h.b16 %v1519
        %v1616 = vunpack.c.l.b16 %v1520
        %v1617 = vunpack.c.h.b16 %v1520
        %v1618 = vunpack.c.l.b16 %v1521
        %v1619 = vunpack.c.h.b16 %v1521
        %v1620 = vunpack.c.l.b16 %v1522
        %v1621 = vunpack.c.h.b16 %v1522
        %v1622 = vunpack.c.l.b16 %v1523
        %v1623 = vunpack.c.h.b16 %v1523
        %v1624 = vunpack.c.l.b16 %v1524
        %v1625 = vunpack.c.h.b16 %v1524
        %v1626 = vunpack.c.l.b16 %v1525
        %v1627 = vunpack.c.h.b16 %v1525
        %v1628 = vunpack.c.l.b16 %v1526
        %v1629 = vunpack.c.h.b16 %v1526
        %v1630 = vunpack.c.l.b16 %v1527
        %v1631 = vunpack.c.h.b16 %v1527
        %v1632 = vunpack.c.l.b16 %v1528
        %v1633 = vunpack.c.h.b16 %v1528
        %v1634 = vunpack.c.l.b16 %v1529
        %v1635 = vunpack.c.h.b16 %v1529
        %v1636 = vunpack.c.l.b16 %v1530
        %v1637 = vunpack.c.h.b16 %v1530
        %v1638 = vunpack.c.l.b16 %v1531
        %v1639 = vunpack.c.h.b16 %v1531
        %v1640 = vunpack.c.l.b16 %v1532
        %v1641 = vunpack.c.h.b16 %v1532
        %v1642 = vunpack.c.l.b16 %v1533
        %v1643 = vunpack.c.h.b16 %v1533
        %v1644 = vunpack.c.l.b16 %v1534
        %v1645 = vunpack.c.h.b16 %v1534
        %v1646 = vunpack.c.l.b16 %v1535
        %v1647 = vunpack.c.h.b16 %v1535
        %v1648 = vpack.c.b16 %v1588, %v1584
        %v1649 = vpack.c.b16 %v1589, %v1585
        %v1650 = vpack.c.b16 %v1590, %v1586
        %v1651 = vpack.c.b16 %v1591, %v1587
        %v1652 = vpack.c.b16 %v1596, %v1592
        %v1653 = vpack.c.b16 %v1597, %v1593
        %v1654 = vpack.c.b16 %v1598, %v1594
        %v1655 = vpack.c.b16 %v1599, %v1595
        %v1656 = vpack.c.b16 %v1604, %v1600
        %v1657 = vpack.c.b16 %v1605, %v1601
        %v1658 = vpack.c.b16 %v1606, %v1602
        %v1659 = vpack.c.b16 %v1607, %v1603
        %v1660 = vpack.c.b16 %v1612, %v1608
        %v1661 = vpack.c.b16 %v1613, %v1609
        %v1662 = vpack.c.b16 %v1614, %v1610
        %v1663 = vpack.c.b16 %v1615, %v1611
        %v1664 = vpack.c.b16 %v1620, %v1616
        %v1665 = vpack.c.b16 %v1621, %v1617
        %v1666 = vpack.c.b16 %v1622, %v1618
        %v1667 = vpack.c.b16 %v1623, %v1619
        %v1668 = vpack.c.b16 %v1628, %v1624
        %v1669 = vpack.c.b16 %v1629, %v1625
        %v1670 = vpack.c.b16 %v1630, %v1626
        %v1671 = vpack.c.b16 %v1631, %v1627
        %v1672 = vpack.c.b16 %v1636, %v1632
        %v1673 = vpack.c.b16 %v1637, %v1633
        %v1674 = vpack.c.b16 %v1638, %v1634
        %v1675 = vpack.c.b16 %v1639, %v1635
        %v1676 = vpack.c.b16 %v1644, %v1640
        %v1677 = vpack.c.b16 %v1645, %v1641
        %v1678 = vpack.c.b16 %v1646, %v1642
        %v1679 = vpack.c.b16 %v1647, %v1643
        %1712 = vmatprep.subr.bf16.mxu0 %v1649
        %1713 = vmatpush1.bf16.msra.mxu0 %v1648
        %1714 = vmatprep.subr.bf16.mxu0 %v1653
        %1715 = vmatpush1.bf16.msra.mxu0 %v1652
        %1716 = vmatprep.subr.bf16.mxu0 %v1657
        %1717 = vmatpush1.bf16.msra.mxu0 %v1656
        %1718 = vmatprep.subr.bf16.mxu0 %v1661
        %1719 = vmatpush1.bf16.msra.mxu0 %v1660
        %1720 = vmatprep.subr.bf16.mxu0 %v1665
        %1721 = vmatpush1.bf16.msra.mxu0 %v1664
        %1722 = vmatprep.subr.bf16.mxu0 %v1669
        %1723 = vmatpush1.bf16.msra.mxu0 %v1668
        %1724 = vmatprep.subr.bf16.mxu0 %v1673
        %1725 = vmatpush1.bf16.msra.mxu0 %v1672
        %1726 = vmatprep.subr.bf16.mxu0 %v1677
        %1727 = vmatpush1.bf16.msra.mxu0 %v1676
        %1728 = vmatprep.subr.bf16.mxu0 0
        %1729 = vmatpush1.bf16.msra.mxu0 0
        %1730 = vmatprep.subr.bf16.mxu0 0
        %1731 = vmatpush1.bf16.msra.mxu0 0
        %1732 = vmatprep.subr.bf16.mxu0 0
        %1733 = vmatpush1.bf16.msra.mxu0 0
        %1734 = vmatprep.subr.bf16.mxu0 0
        %1735 = vmatpush1.bf16.msra.mxu0 0
        %1736 = vmatprep.subr.bf16.mxu0 0
        %1737 = vmatpush1.bf16.msra.mxu0 0
        %1738 = vmatprep.subr.bf16.mxu0 0
        %1739 = vmatpush1.bf16.msra.mxu0 0
        %1740 = vmatprep.subr.bf16.mxu0 0
        %1741 = vmatpush1.bf16.msra.mxu0 0
        %1742 = vmatprep.subr.bf16.mxu0 0
        %1743 = vmatpush1.bf16.msra.mxu0 0
        %1744 = vmatprep.mubr.bf16.mxu0 0
        %1745 = vmatmul.mubr.bf16.gmra.mrb[0].mxu0 %v1503
        %v1746 = vpop.f32.mrb[0].mxu0
        %v1747 = vadd.f32 %v1539, %v1746
        %v1748 = vpop.f32.mrb[0].mxu0
        %v1749 = vadd.f32 %v1543, %v1748
        %v1750 = vpop.f32.mrb[0].mxu0
        %v1751 = vadd.f32 %v1539, %v1750
        %v1752 = vpop.f32.mrb[0].mxu0
        %v1753 = vadd.f32 %v1543, %v1752
        %1754 = vdwg.mxu0
        %1755 = vmatprep.subr.bf16.mxu0 %v1651
        %1756 = vmatpush1.bf16.msra.mxu0 %v1650
        %1757 = vmatprep.subr.bf16.mxu0 %v1655
        %1758 = vmatpush1.bf16.msra.mxu0 %v1654
        %1759 = vmatprep.subr.bf16.mxu0 %v1659
        %1760 = vmatpush1.bf16.msra.mxu0 %v1658
        %1761 = vmatprep.subr.bf16.mxu0 %v1663
        %1762 = vmatpush1.bf16.msra.mxu0 %v1662
        %1763 = vmatprep.subr.bf16.mxu0 %v1667
        %1764 = vmatpush1.bf16.msra.mxu0 %v1666
        %1765 = vmatprep.subr.bf16.mxu0 %v1671
        %1766 = vmatpush1.bf16.msra.mxu0 %v1670
        %1767 = vmatprep.subr.bf16.mxu0 %v1675
        %1768 = vmatpush1.bf16.msra.mxu0 %v1674
        %1769 = vmatprep.subr.bf16.mxu0 %v1679
        %1770 = vmatpush1.bf16.msra.mxu0 %v1678
        %1771 = vmatprep.subr.bf16.mxu0 0
        %1772 = vmatpush1.bf16.msra.mxu0 0
        %1773 = vmatprep.subr.bf16.mxu0 0
        %1774 = vmatpush1.bf16.msra.mxu0 0
        %1775 = vmatprep.subr.bf16.mxu0 0
        %1776 = vmatpush1.bf16.msra.mxu0 0
        %1777 = vmatprep.subr.bf16.mxu0 0
        %1778 = vmatpush1.bf16.msra.mxu0 0
        %1779 = vmatprep.subr.bf16.mxu0 0
        %1780 = vmatpush1.bf16.msra.mxu0 0
        %1781 = vmatprep.subr.bf16.mxu0 0
        %1782 = vmatpush1.bf16.msra.mxu0 0
        %1783 = vmatprep.subr.bf16.mxu0 0
        %1784 = vmatpush1.bf16.msra.mxu0 0
        %1785 = vmatprep.subr.bf16.mxu0 0
        %1786 = vmatpush1.bf16.msra.mxu0 0
        %1787 = vmatprep.mubr.bf16.mxu0 0
        %1788 = vmatmul.mubr.bf16.gmra.mrb[0].mxu0 %v1503
        %v1789 = vpop.f32.mrb[0].mxu0
        %v1790 = vadd.f32 %v1547, %v1789
        %v1791 = vpop.f32.mrb[0].mxu0
        %v1792 = vadd.f32 %v1551, %v1791
        %v1793 = vpop.f32.mrb[0].mxu0
        %v1794 = vadd.f32 %v1547, %v1793
        %v1795 = vpop.f32.mrb[0].mxu0
        %v1796 = vadd.f32 %v1551, %v1795
        %1797 = vdwg.mxu0
        %v1798 = vmul.f32 %v1747, 0.5
        %v1799 = vmul.f32 %v1749, 0.5
        %v1800 = vmul.f32 %v1790, 0.5
        %v1801 = vmul.f32 %v1792, 0.5
        %v1802 = vmul.f32 %v1751, 0.5
        %v1803 = vmul.f32 %v1753, 0.5
        %v1804 = vmul.f32 %v1794, 0.5
        %v1805 = vmul.f32 %v1796, 0.5
        %v1806 = vmul.f32 %v1747, 0.044715
        %v1807 = vmul.f32 %v1749, 0.044715
        %v1808 = vmul.f32 %v1790, 0.044715
        %v1809 = vmul.f32 %v1792, 0.044715
        %v1810 = vmul.f32 %v1751, 0.044715
        %v1811 = vmul.f32 %v1753, 0.044715
        %v1812 = vmul.f32 %v1794, 0.044715
        %v1813 = vmul.f32 %v1796, 0.044715
        %v1814 = vmul.f32 %v1806, %v1747
        %v1815 = vmul.f32 %v1807, %v1749
        %v1816 = vmul.f32 %v1808, %v1790
        %v1817 = vmul.f32 %v1809, %v1792
        %v1818 = vmul.f32 %v1810, %v1751
        %v1819 = vmul.f32 %v1811, %v1753
        %v1820 = vmul.f32 %v1812, %v1794
        %v1821 = vmul.f32 %v1813, %v1796
        %v1822 = vmul.f32 %v1814, %v1747
        %v1823 = vmul.f32 %v1815, %v1749
        %v1824 = vmul.f32 %v1816, %v1790
        %v1825 = vmul.f32 %v1817, %v1792
        %v1826 = vmul.f32 %v1818, %v1751
        %v1827 = vmul.f32 %v1819, %v1753
        %v1828 = vmul.f32 %v1820, %v1794
        %v1829 = vmul.f32 %v1821, %v1796
        %v1830 = vadd.f32 %v1747, %v1822
        %v1831 = vadd.f32 %v1749, %v1823
        %v1832 = vadd.f32 %v1790, %v1824
        %v1833 = vadd.f32 %v1792, %v1825
        %v1834 = vadd.f32 %v1751, %v1826
        %v1835 = vadd.f32 %v1753, %v1827
        %v1836 = vadd.f32 %v1794, %v1828
        %v1837 = vadd.f32 %v1796, %v1829
        %v1838 = vmul.f32 %v1830, 0.7978846
        %v1839 = vmul.f32 %v1831, 0.7978846
        %v1840 = vmul.f32 %v1832, 0.7978846
        %v1841 = vmul.f32 %v1833, 0.7978846
        %v1842 = vmul.f32 %v1834, 0.7978846
        %v1843 = vmul.f32 %v1835, 0.7978846
        %v1844 = vmul.f32 %v1836, 0.7978846
        %v1845 = vmul.f32 %v1837, 0.7978846
        %v1846 = vtanh.pop %v1838
        %v1847 = vtanh.pop %v1839
        %v1848 = vtanh.pop %v1840
        %v1849 = vtanh.pop %v1841
        %v1850 = vtanh.pop %v1842
        %v1851 = vtanh.pop %v1843
        %v1852 = vtanh.pop %v1844
        %v1853 = vtanh.pop %v1845
        %v1854 = vadd.f32 %v1846, 1.0
        %v1855 = vadd.f32 %v1847, 1.0
        %v1856 = vadd.f32 %v1848, 1.0
        %v1857 = vadd.f32 %v1849, 1.0
        %v1858 = vadd.f32 %v1850, 1.0
        %v1859 = vadd.f32 %v1851, 1.0
        %v1860 = vadd.f32 %v1852, 1.0
        %v1861 = vadd.f32 %v1853, 1.0
        %v1862 = vmul.f32 %v1798, %v1854
        %v1863 = vmul.f32 %v1799, %v1855
        %v1864 = vmul.f32 %v1800, %v1856
        %v1865 = vmul.f32 %v1801, %v1857
        %v1866 = vmul.f32 %v1802, %v1858
        %v1867 = vmul.f32 %v1803, %v1859
        %v1868 = vmul.f32 %v1804, %v1860
        %v1869 = vmul.f32 %v1805, %v1861
        %v1870 = vpack.c.bf16 %v1866, %v1862
        %v1871 = vpack.c.bf16 %v1867, %v1863
        %v1872 = vpack.c.bf16 %v1868, %v1864
        %v1873 = vpack.c.bf16 %v1869, %v1865
        %v1874 = vld [vmem:[%s421] sm:$0xf]
        %v1875 = vld [vmem:[%s421 + $0x4] sm:$0xf]
        %v1876 = vld [vmem:[%s421 + $0x8] sm:$0xf]
        %v1877 = vld [vmem:[%s421 + $0xc] sm:$0xf]
        %v1878 = vld [vmem:[%s421 + $0x10] sm:$0xf]
        %v1879 = vld [vmem:[%s421 + $0x14] sm:$0xf]
        %v1880 = vld [vmem:[%s421 + $0x18] sm:$0xf]
        %v1881 = vld [vmem:[%s421 + $0x1c] sm:$0xf]
        %v1882 = vld [vmem:[%s421 + $0x20] sm:$0xf]
        %v1883 = vld [vmem:[%s421 + $0x24] sm:$0xf]
        %v1884 = vld [vmem:[%s421 + $0x28] sm:$0xf]
        %v1885 = vld [vmem:[%s421 + $0x2c] sm:$0xf]
        %v1886 = vld [vmem:[%s421 + $0x30] sm:$0xf]
        %v1887 = vld [vmem:[%s421 + $0x34] sm:$0xf]
        %v1888 = vld [vmem:[%s421 + $0x38] sm:$0xf]
        %v1889 = vld [vmem:[%s421 + $0x3c] sm:$0xf]
        %v1890 = vld [vmem:[%s421 + $0x40] sm:$0xf]
        %v1891 = vld [vmem:[%s421 + $0x44] sm:$0xf]
        %v1892 = vld [vmem:[%s421 + $0x48] sm:$0xf]
        %v1893 = vld [vmem:[%s421 + $0x4c] sm:$0xf]
        %v1894 = vld [vmem:[%s421 + $0x50] sm:$0xf]
        %v1895 = vld [vmem:[%s421 + $0x54] sm:$0xf]
        %v1896 = vld [vmem:[%s421 + $0x58] sm:$0xf]
        %v1897 = vld [vmem:[%s421 + $0x5c] sm:$0xf]
        %v1898 = vld [vmem:[%s421 + $0x60] sm:$0xf]
        %v1899 = vld [vmem:[%s421 + $0x64] sm:$0xf]
        %v1900 = vld [vmem:[%s421 + $0x68] sm:$0xf]
        %v1901 = vld [vmem:[%s421 + $0x6c] sm:$0xf]
        %v1902 = vld [vmem:[%s421 + $0x70] sm:$0xf]
        %v1903 = vld [vmem:[%s421 + $0x74] sm:$0xf]
        %v1904 = vld [vmem:[%s421 + $0x78] sm:$0xf]
        %v1905 = vld [vmem:[%s421 + $0x7c] sm:$0xf]
        %v1906 = vld [vmem:[%s421 + $0x80] sm:$0xf]
        %v1907 = vld [vmem:[%s421 + $0x84] sm:$0xf]
        %v1908 = vld [vmem:[%s421 + $0x88] sm:$0xf]
        %v1909 = vld [vmem:[%s421 + $0x8c] sm:$0xf]
        %v1910 = vld [vmem:[%s421 + $0x90] sm:$0xf]
        %v1911 = vld [vmem:[%s421 + $0x94] sm:$0xf]
        %v1912 = vld [vmem:[%s421 + $0x98] sm:$0xf]
        %v1913 = vld [vmem:[%s421 + $0x9c] sm:$0xf]
        %v1914 = vld [vmem:[%s421 + $0xa0] sm:$0xf]
        %v1915 = vld [vmem:[%s421 + $0xa4] sm:$0xf]
        %v1916 = vld [vmem:[%s421 + $0xa8] sm:$0xf]
        %v1917 = vld [vmem:[%s421 + $0xac] sm:$0xf]
        %v1918 = vld [vmem:[%s421 + $0xb0] sm:$0xf]
        %v1919 = vld [vmem:[%s421 + $0xb4] sm:$0xf]
        %v1920 = vld [vmem:[%s421 + $0xb8] sm:$0xf]
        %v1921 = vld [vmem:[%s421 + $0xbc] sm:$0xf]
        %v1922 = vld [vmem:[%s421 + $0xc0] sm:$0xf]
        %v1923 = vld [vmem:[%s421 + $0xc4] sm:$0xf]
        %v1924 = vld [vmem:[%s421 + $0xc8] sm:$0xf]
        %v1925 = vld [vmem:[%s421 + $0xcc] sm:$0xf]
        %v1926 = vld [vmem:[%s421 + $0xd0] sm:$0xf]
        %v1927 = vld [vmem:[%s421 + $0xd4] sm:$0xf]
        %v1928 = vld [vmem:[%s421 + $0xd8] sm:$0xf]
        %v1929 = vld [vmem:[%s421 + $0xdc] sm:$0xf]
        %v1930 = vld [vmem:[%s421 + $0xe0] sm:$0xf]
        %v1931 = vld [vmem:[%s421 + $0xe4] sm:$0xf]
        %v1932 = vld [vmem:[%s421 + $0xe8] sm:$0xf]
        %v1933 = vld [vmem:[%s421 + $0xec] sm:$0xf]
        %v1934 = vld [vmem:[%s421 + $0xf0] sm:$0xf]
        %v1935 = vld [vmem:[%s421 + $0xf4] sm:$0xf]
        %v1936 = vld [vmem:[%s421 + $0xf8] sm:$0xf]
        %v1937 = vld [vmem:[%s421 + $0xfc] sm:$0xf]
        %v1938 = vlaneseq
        %v1939 = vshrl.u32 %v1938, 7
        %v1940 = vsub.s32 5, %v1939
        %v1941 = vrot.slane %v532, %v1940
        %v2006 = vunpack.c.l.b16 %v1874
        %v2007 = vunpack.c.l.b16 %v1875
        %v2008 = vunpack.c.l.b16 %v1876
        %v2009 = vunpack.c.l.b16 %v1877
        %v2010 = vunpack.c.l.b16 %v1878
        %v2011 = vunpack.c.l.b16 %v1879
        %v2012 = vunpack.c.l.b16 %v1880
        %v2013 = vunpack.c.l.b16 %v1881
        %v2014 = vunpack.c.l.b16 %v1882
        %v2015 = vunpack.c.l.b16 %v1883
        %v2016 = vunpack.c.l.b16 %v1884
        %v2017 = vunpack.c.l.b16 %v1885
        %v2018 = vunpack.c.l.b16 %v1886
        %v2019 = vunpack.c.l.b16 %v1887
        %v2020 = vunpack.c.l.b16 %v1888
        %v2021 = vunpack.c.l.b16 %v1889
        %v2022 = vunpack.c.l.b16 %v1890
        %v2023 = vunpack.c.l.b16 %v1891
        %v2024 = vunpack.c.l.b16 %v1892
        %v2025 = vunpack.c.l.b16 %v1893
        %v2026 = vunpack.c.l.b16 %v1894
        %v2027 = vunpack.c.l.b16 %v1895
        %v2028 = vunpack.c.l.b16 %v1896
        %v2029 = vunpack.c.l.b16 %v1897
        %v2030 = vunpack.c.l.b16 %v1898
        %v2031 = vunpack.c.l.b16 %v1899
        %v2032 = vunpack.c.l.b16 %v1900
        %v2033 = vunpack.c.l.b16 %v1901
        %v2034 = vunpack.c.l.b16 %v1902
        %v2035 = vunpack.c.l.b16 %v1903
        %v2036 = vunpack.c.l.b16 %v1904
        %v2037 = vunpack.c.l.b16 %v1905
        %v2038 = vunpack.c.l.b16 %v1906
        %v2039 = vunpack.c.l.b16 %v1907
        %v2040 = vunpack.c.l.b16 %v1908
        %v2041 = vunpack.c.l.b16 %v1909
        %v2042 = vunpack.c.l.b16 %v1910
        %v2043 = vunpack.c.l.b16 %v1911
        %v2044 = vunpack.c.l.b16 %v1912
        %v2045 = vunpack.c.l.b16 %v1913
        %v2046 = vunpack.c.l.b16 %v1914
        %v2047 = vunpack.c.l.b16 %v1915
        %v2048 = vunpack.c.l.b16 %v1916
        %v2049 = vunpack.c.l.b16 %v1917
        %v2050 = vunpack.c.l.b16 %v1918
        %v2051 = vunpack.c.l.b16 %v1919
        %v2052 = vunpack.c.l.b16 %v1920
        %v2053 = vunpack.c.l.b16 %v1921
        %v2054 = vunpack.c.l.b16 %v1922
        %v2055 = vunpack.c.l.b16 %v1923
        %v2056 = vunpack.c.l.b16 %v1924
        %v2057 = vunpack.c.l.b16 %v1925
        %v2058 = vunpack.c.l.b16 %v1926
        %v2059 = vunpack.c.l.b16 %v1927
        %v2060 = vunpack.c.l.b16 %v1928
        %v2061 = vunpack.c.l.b16 %v1929
        %v2062 = vunpack.c.l.b16 %v1930
        %v2063 = vunpack.c.l.b16 %v1931
        %v2064 = vunpack.c.l.b16 %v1932
        %v2065 = vunpack.c.l.b16 %v1933
        %v2066 = vunpack.c.l.b16 %v1934
        %v2067 = vunpack.c.l.b16 %v1935
        %v2068 = vunpack.c.l.b16 %v1936
        %v2069 = vunpack.c.l.b16 %v1937
        %v2070 = vpack.c.b16 %v2007, %v2006
        %v2071 = vpack.c.b16 %v2009, %v2008
        %v2072 = vpack.c.b16 %v2011, %v2010
        %v2073 = vpack.c.b16 %v2013, %v2012
        %v2074 = vpack.c.b16 %v2015, %v2014
        %v2075 = vpack.c.b16 %v2017, %v2016
        %v2076 = vpack.c.b16 %v2019, %v2018
        %v2077 = vpack.c.b16 %v2021, %v2020
        %v2078 = vpack.c.b16 %v2023, %v2022
        %v2079 = vpack.c.b16 %v2025, %v2024
        %v2080 = vpack.c.b16 %v2027, %v2026
        %v2081 = vpack.c.b16 %v2029, %v2028
        %v2082 = vpack.c.b16 %v2031, %v2030
        %v2083 = vpack.c.b16 %v2033, %v2032
        %v2084 = vpack.c.b16 %v2035, %v2034
        %v2085 = vpack.c.b16 %v2037, %v2036
        %v2086 = vpack.c.b16 %v2039, %v2038
        %v2087 = vpack.c.b16 %v2041, %v2040
        %v2088 = vpack.c.b16 %v2043, %v2042
        %v2089 = vpack.c.b16 %v2045, %v2044
        %v2090 = vpack.c.b16 %v2047, %v2046
        %v2091 = vpack.c.b16 %v2049, %v2048
        %v2092 = vpack.c.b16 %v2051, %v2050
        %v2093 = vpack.c.b16 %v2053, %v2052
        %v2094 = vpack.c.b16 %v2055, %v2054
        %v2095 = vpack.c.b16 %v2057, %v2056
        %v2096 = vpack.c.b16 %v2059, %v2058
        %v2097 = vpack.c.b16 %v2061, %v2060
        %v2098 = vpack.c.b16 %v2063, %v2062
        %v2099 = vpack.c.b16 %v2065, %v2064
        %v2100 = vpack.c.b16 %v2067, %v2066
        %v2101 = vpack.c.b16 %v2069, %v2068
        %2134 = vmatprep.subr.bf16.mxu0 0
        %2135 = vmatpush1.bf16.msra.mxu0 %v2070
        %2136 = vmatprep.subr.bf16.mxu0 0
        %2137 = vmatpush1.bf16.msra.mxu0 %v2071
        %2138 = vmatprep.subr.bf16.mxu0 0
        %2139 = vmatpush1.bf16.msra.mxu0 %v2072
        %2140 = vmatprep.subr.bf16.mxu0 0
        %2141 = vmatpush1.bf16.msra.mxu0 %v2073
        %2142 = vmatprep.subr.bf16.mxu0 0
        %2143 = vmatpush1.bf16.msra.mxu0 %v2074
        %2144 = vmatprep.subr.bf16.mxu0 0
        %2145 = vmatpush1.bf16.msra.mxu0 %v2075
        %2146 = vmatprep.subr.bf16.mxu0 0
        %2147 = vmatpush1.bf16.msra.mxu0 %v2076
        %2148 = vmatprep.subr.bf16.mxu0 0
        %2149 = vmatpush1.bf16.msra.mxu0 %v2077
        %2150 = vmatprep.subr.bf16.mxu0 0
        %2151 = vmatpush1.bf16.msra.mxu0 %v2078
        %2152 = vmatprep.subr.bf16.mxu0 0
        %2153 = vmatpush1.bf16.msra.mxu0 %v2079
        %2154 = vmatprep.subr.bf16.mxu0 0
        %2155 = vmatpush1.bf16.msra.mxu0 %v2080
        %2156 = vmatprep.subr.bf16.mxu0 0
        %2157 = vmatpush1.bf16.msra.mxu0 %v2081
        %2158 = vmatprep.subr.bf16.mxu0 0
        %2159 = vmatpush1.bf16.msra.mxu0 %v2082
        %2160 = vmatprep.subr.bf16.mxu0 0
        %2161 = vmatpush1.bf16.msra.mxu0 %v2083
        %2162 = vmatprep.subr.bf16.mxu0 0
        %2163 = vmatpush1.bf16.msra.mxu0 %v2084
        %2164 = vmatprep.subr.bf16.mxu0 0
        %2165 = vmatpush1.bf16.msra.mxu0 %v2085
        %2166 = vmatprep.mubr.bf16.mxu0 %v1871
        %2167 = vmatmul.mubr.bf16.gmra.mrb[0].mxu0 %v1870
        %v2168 = vpop.f32.mrb[0].mxu0
        %v2169 = vadd.f32 %v1941, %v2168
        %v2170 = vpop.f32.mrb[0].mxu0
        %v2171 = vpop.f32.mrb[0].mxu0
        %v2172 = vadd.f32 %v1941, %v2171
        %v2173 = vpop.f32.mrb[0].mxu0
        %2174 = vdwg.mxu0
        %2175 = vmatprep.subr.bf16.mxu0 0
        %2176 = vmatpush1.bf16.msra.mxu0 %v2086
        %2177 = vmatprep.subr.bf16.mxu0 0
        %2178 = vmatpush1.bf16.msra.mxu0 %v2087
        %2179 = vmatprep.subr.bf16.mxu0 0
        %2180 = vmatpush1.bf16.msra.mxu0 %v2088
        %2181 = vmatprep.subr.bf16.mxu0 0
        %2182 = vmatpush1.bf16.msra.mxu0 %v2089
        %2183 = vmatprep.subr.bf16.mxu0 0
        %2184 = vmatpush1.bf16.msra.mxu0 %v2090
        %2185 = vmatprep.subr.bf16.mxu0 0
        %2186 = vmatpush1.bf16.msra.mxu0 %v2091
        %2187 = vmatprep.subr.bf16.mxu0 0
        %2188 = vmatpush1.bf16.msra.mxu0 %v2092
        %2189 = vmatprep.subr.bf16.mxu0 0
        %2190 = vmatpush1.bf16.msra.mxu0 %v2093
        %2191 = vmatprep.subr.bf16.mxu0 0
        %2192 = vmatpush1.bf16.msra.mxu0 %v2094
        %2193 = vmatprep.subr.bf16.mxu0 0
        %2194 = vmatpush1.bf16.msra.mxu0 %v2095
        %2195 = vmatprep.subr.bf16.mxu0 0
        %2196 = vmatpush1.bf16.msra.mxu0 %v2096
        %2197 = vmatprep.subr.bf16.mxu0 0
        %2198 = vmatpush1.bf16.msra.mxu0 %v2097
        %2199 = vmatprep.subr.bf16.mxu0 0
        %2200 = vmatpush1.bf16.msra.mxu0 %v2098
        %2201 = vmatprep.subr.bf16.mxu0 0
        %2202 = vmatpush1.bf16.msra.mxu0 %v2099
        %2203 = vmatprep.subr.bf16.mxu0 0
        %2204 = vmatpush1.bf16.msra.mxu0 %v2100
        %2205 = vmatprep.subr.bf16.mxu0 0
        %2206 = vmatpush1.bf16.msra.mxu0 %v2101
        %2207 = vmatprep.mubr.bf16.mxu0 %v1873
        %2208 = vmatmul.mubr.bf16.gmra.mrb[0].mxu0 %v1872
        %v2209 = vpop.f32.mrb[0].mxu0
        %v2210 = vadd.f32 %v2169, %v2209
        %v2211 = vpop.f32.mrb[0].mxu0
        %v2212 = vpop.f32.mrb[0].mxu0
        %v2213 = vadd.f32 %v2172, %v2212
        %v2214 = vpop.f32.mrb[0].mxu0
        %2215 = vdwg.mxu0
        %v2216 = vadd.f32 %v2210, %v1501
        %v2217 = vadd.f32 %v2213, %v1502
        %2218 = vadd.xlane.f32.xlu0 %v2216
        %v2219 = vpop.xlane.xlu0 %2218
        %2220 = vadd.xlane.f32.xlu0 %v2217
        %v2221 = vpop.xlane.xlu0 %2220
        %v2222 = vmul.f32 %v2219, %v1472
        %v2223 = vmul.f32 %v2221, %v1472
        %v2224 = vsub.f32 %v2216, %v2222
        %v2225 = vsub.f32 %v2217, %v2223
        %v2226 = vmul.f32 %v2224, %v2224
        %v2227 = vmul.f32 %v2225, %v2225
        %2228 = vadd.xlane.f32.xlu0 %v2226
        %v2229 = vpop.xlane.xlu0 %2228
        %2230 = vadd.xlane.f32.xlu0 %v2227
        %v2231 = vpop.xlane.xlu0 %2230
        %v2232 = vmul.f32 %v2229, %v1472
        %v2233 = vmul.f32 %v2231, %v1472
        %v2234 = vadd.f32 %v2232, 1e-12
        %v2235 = vadd.f32 %v2233, 1e-12
        %v2236 = vrsqrt.pop %v2234
        %v2237 = vrsqrt.pop %v2235
        %v2238 = vmul.f32 %v2224, %v2236
        %v2239 = vmul.f32 %v2225, %v2237
        %v2240 = vlaneseq
        %v2241 = vshrl.u32 %v2240, 7
        %v2242 = vsub.s32 6, %v2241
        %v2243 = vrot.slane %v532, %v2242
        %v2244 = vmul.f32 %v2238, %v2243
        %v2245 = vmul.f32 %v2239, %v2243
        %v2246 = vlaneseq
        %v2247 = vshrl.u32 %v2246, 7
        %v2248 = vsub.s32 7, %v2247
        %v2249 = vrot.slane %v532, %v2248
        %v2250 = vadd.f32 %v2244, %v2249
        %v2251 = vadd.f32 %v2245, %v2249
        %2252 = vst [vmem:[#allocation2] sm:$0xff] %v2250
        %2253 = vst [vmem:[#allocation2 + $0x8] sm:$0xff] %v2251
        %p2254 = scmp.eq.s32.totalorder %s28, 1
        // Predicated region
        $region77: #{text_bert_forward.1} parent=59 // pred_check
          %p2255 = pneg %p2254
        $region78: #{text_bert_forward.1} parent=59 // pred_check_branch
          %2257 = sbr.rel (%p2255) target = $region80
        $region79: #{text_bert_forward.1} parent=59 // pred_region
          %v2258 = vpack.c.bf16 %v2250, %v2250
          %v2259 = vpack.c.bf16 %v2251, %v2251
          %v2260 = vld [vmem:[%s3] sm:$0xf]
          %v2261 = vld [vmem:[%s3 + $0x4] sm:$0xf]
          %v2262 = vld [vmem:[%s3 + $0x8] sm:$0xf]
          %v2263 = vld [vmem:[%s3 + $0xc] sm:$0xf]
          %v2264 = vld [vmem:[%s3 + $0x10] sm:$0xf]
          %v2265 = vld [vmem:[%s3 + $0x14] sm:$0xf]
          %v2266 = vld [vmem:[%s3 + $0x18] sm:$0xf]
          %v2267 = vld [vmem:[%s3 + $0x1c] sm:$0xf]
          %v2268 = vld [vmem:[%s3 + $0x20] sm:$0xf]
          %v2269 = vld [vmem:[%s3 + $0x24] sm:$0xf]
          %v2270 = vld [vmem:[%s3 + $0x28] sm:$0xf]
          %v2271 = vld [vmem:[%s3 + $0x2c] sm:$0xf]
          %v2272 = vld [vmem:[%s3 + $0x30] sm:$0xf]
          %v2273 = vld [vmem:[%s3 + $0x34] sm:$0xf]
          %v2274 = vld [vmem:[%s3 + $0x38] sm:$0xf]
          %v2275 = vld [vmem:[%s3 + $0x3c] sm:$0xf]
          %v2276 = vld [vmem:[%s2 + $0x2] sm:$0x1]
          %v2277 = vlaneseq
          %v2278 = vshrl.u32 %v2277, 7
          %v2279 = vsub.s32 0, %v2278
          %v2280 = vrot.slane %v2276, %v2279
          %v2283 = vunpack.c.l.b16 %v2258
          %v2284 = vunpack.c.l.b16 %v2259
          %v2285 = vrot.slane %v2284, 7
          %vm2286 = vcmask 1041409
          %v2287 = vsel %vm2286, %v2285, %v2283
          %v2288 = vpack.c.b16 %v2287, %v2287
          %v2306 = vunpack.c.l.b16 %v2260
          %v2307 = vunpack.c.l.b16 %v2261
          %v2308 = vunpack.c.l.b16 %v2262
          %v2309 = vunpack.c.l.b16 %v2263
          %v2310 = vunpack.c.l.b16 %v2264
          %v2311 = vunpack.c.l.b16 %v2265
          %v2312 = vunpack.c.l.b16 %v2266
          %v2313 = vunpack.c.l.b16 %v2267
          %v2314 = vunpack.c.l.b16 %v2268
          %v2315 = vunpack.c.l.b16 %v2269
          %v2316 = vunpack.c.l.b16 %v2270
          %v2317 = vunpack.c.l.b16 %v2271
          %v2318 = vunpack.c.l.b16 %v2272
          %v2319 = vunpack.c.l.b16 %v2273
          %v2320 = vunpack.c.l.b16 %v2274
          %v2321 = vunpack.c.l.b16 %v2275
          %v2322 = vpack.c.b16 %v2307, %v2306
          %v2323 = vpack.c.b16 %v2309, %v2308
          %v2324 = vpack.c.b16 %v2311, %v2310
          %v2325 = vpack.c.b16 %v2313, %v2312
          %v2326 = vpack.c.b16 %v2315, %v2314
          %v2327 = vpack.c.b16 %v2317, %v2316
          %v2328 = vpack.c.b16 %v2319, %v2318
          %v2329 = vpack.c.b16 %v2321, %v2320
          %2338 = vmatprep.subr.bf16.mxu0 0
          %2339 = vmatpush1.bf16.msra.mxu0 %v2322
          %2340 = vmatprep.subr.bf16.mxu0 0
          %2341 = vmatpush1.bf16.msra.mxu0 %v2323
          %2342 = vmatprep.subr.bf16.mxu0 0
          %2343 = vmatpush1.bf16.msra.mxu0 %v2324
          %2344 = vmatprep.subr.bf16.mxu0 0
          %2345 = vmatpush1.bf16.msra.mxu0 %v2325
          %2346 = vmatprep.subr.bf16.mxu0 0
          %2347 = vmatpush1.bf16.msra.mxu0 %v2326
          %2348 = vmatprep.subr.bf16.mxu0 0
          %2349 = vmatpush1.bf16.msra.mxu0 %v2327
          %2350 = vmatprep.subr.bf16.mxu0 0
          %2351 = vmatpush1.bf16.msra.mxu0 %v2328
          %2352 = vmatprep.subr.bf16.mxu0 0
          %2353 = vmatpush1.bf16.msra.mxu0 %v2329
          %2354 = vmatprep.subr.bf16.mxu0 0
          %2355 = vmatpush1.bf16.msra.mxu0 0
          %2356 = vmatprep.subr.bf16.mxu0 0
          %2357 = vmatpush1.bf16.msra.mxu0 0
          %2358 = vmatprep.subr.bf16.mxu0 0
          %2359 = vmatpush1.bf16.msra.mxu0 0
          %2360 = vmatprep.subr.bf16.mxu0 0
          %2361 = vmatpush1.bf16.msra.mxu0 0
          %2362 = vmatprep.subr.bf16.mxu0 0
          %2363 = vmatpush1.bf16.msra.mxu0 0
          %2364 = vmatprep.subr.bf16.mxu0 0
          %2365 = vmatpush1.bf16.msra.mxu0 0
          %2366 = vmatprep.subr.bf16.mxu0 0
          %2367 = vmatpush1.bf16.msra.mxu0 0
          %2368 = vmatprep.subr.bf16.mxu0 0
          %2369 = vmatpush1.bf16.msra.mxu0 0
          %2370 = vmatprep.mubr.bf16.mxu0 0
          %2371 = vmatmul.mubr.bf16.gmra.mrb[0].mxu0 %v2288
          %v2372 = vpop.f32.mrb[0].mxu0
          %v2373 = vadd.f32 %v2280, %v2372
          %v2374 = vpop.f32.mrb[0].mxu0
          %v2375 = vpop.f32.mrb[0].mxu0
          %v2376 = vpop.f32.mrb[0].mxu0
          %2377 = vdwg.mxu0
          %v2378 = vtanh.pop %v2373
          %v2379 = vpack.c.bf16 %v2378, %v2378
          %v2380 = vld [vmem:[%s4] sm:$0xf]
          %v2381 = vld [vmem:[%s4 + $0x4] sm:$0xf]
          %v2382 = vld [vmem:[%s4 + $0x8] sm:$0xf]
          %v2383 = vld [vmem:[%s4 + $0xc] sm:$0xf]
          %v2384 = vld [vmem:[%s4 + $0x10] sm:$0xf]
          %v2385 = vld [vmem:[%s4 + $0x14] sm:$0xf]
          %v2386 = vld [vmem:[%s4 + $0x18] sm:$0xf]
          %v2387 = vld [vmem:[%s4 + $0x1c] sm:$0xf]
          %v2388 = vld [vmem:[%s4 + $0x20] sm:$0xf]
          %v2389 = vld [vmem:[%s4 + $0x24] sm:$0xf]
          %v2390 = vld [vmem:[%s4 + $0x28] sm:$0xf]
          %v2391 = vld [vmem:[%s4 + $0x2c] sm:$0xf]
          %v2392 = vld [vmem:[%s4 + $0x30] sm:$0xf]
          %v2393 = vld [vmem:[%s4 + $0x34] sm:$0xf]
          %v2394 = vld [vmem:[%s4 + $0x38] sm:$0xf]
          %v2395 = vld [vmem:[%s4 + $0x3c] sm:$0xf]
          %v2396 = vld [vmem:[%s2 + $0x3] sm:$0x1]
          %v2397 = vlaneseq
          %v2398 = vshrl.u32 %v2397, 7
          %v2399 = vsub.s32 0, %v2398
          %v2400 = vrot.slane %v2396, %v2399
          %v2417 = vunpack.c.l.b16 %v2380
          %v2418 = vunpack.c.l.b16 %v2381
          %v2419 = vunpack.c.l.b16 %v2382
          %v2420 = vunpack.c.l.b16 %v2383
          %v2421 = vunpack.c.l.b16 %v2384
          %v2422 = vunpack.c.l.b16 %v2385
          %v2423 = vunpack.c.l.b16 %v2386
          %v2424 = vunpack.c.l.b16 %v2387
          %v2425 = vunpack.c.l.b16 %v2388
          %v2426 = vunpack.c.l.b16 %v2389
          %v2427 = vunpack.c.l.b16 %v2390
          %v2428 = vunpack.c.l.b16 %v2391
          %v2429 = vunpack.c.l.b16 %v2392
          %v2430 = vunpack.c.l.b16 %v2393
          %v2431 = vunpack.c.l.b16 %v2394
          %v2432 = vunpack.c.l.b16 %v2395
          %v2433 = vpack.c.b16 %v2418, %v2417
          %v2434 = vpack.c.b16 %v2420, %v2419
          %v2435 = vpack.c.b16 %v2422, %v2421
          %v2436 = vpack.c.b16 %v2424, %v2423
          %v2437 = vpack.c.b16 %v2426, %v2425
          %v2438 = vpack.c.b16 %v2428, %v2427
          %v2439 = vpack.c.b16 %v2430, %v2429
          %v2440 = vpack.c.b16 %v2432, %v2431
          %2449 = vmatprep.subr.bf16.mxu0 0
          %2450 = vmatpush1.bf16.msra.mxu0 %v2433
          %2451 = vmatprep.subr.bf16.mxu0 0
          %2452 = vmatpush1.bf16.msra.mxu0 %v2434
          %2453 = vmatprep.subr.bf16.mxu0 0
          %2454 = vmatpush1.bf16.msra.mxu0 %v2435
          %2455 = vmatprep.subr.bf16.mxu0 0
          %2456 = vmatpush1.bf16.msra.mxu0 %v2436
          %2457 = vmatprep.subr.bf16.mxu0 0
          %2458 = vmatpush1.bf16.msra.mxu0 %v2437
          %2459 = vmatprep.subr.bf16.mxu0 0
          %2460 = vmatpush1.bf16.msra.mxu0 %v2438
          %2461 = vmatprep.subr.bf16.mxu0 0
          %2462 = vmatpush1.bf16.msra.mxu0 %v2439
          %2463 = vmatprep.subr.bf16.mxu0 0
          %2464 = vmatpush1.bf16.msra.mxu0 %v2440
          %2465 = vmatprep.subr.bf16.mxu0 0
          %2466 = vmatpush1.bf16.msra.mxu0 0
          %2467 = vmatprep.subr.bf16.mxu0 0
          %2468 = vmatpush1.bf16.msra.mxu0 0
          %2469 = vmatprep.subr.bf16.mxu0 0
          %2470 = vmatpush1.bf16.msra.mxu0 0
          %2471 = vmatprep.subr.bf16.mxu0 0
          %2472 = vmatpush1.bf16.msra.mxu0 0
          %2473 = vmatprep.subr.bf16.mxu0 0
          %2474 = vmatpush1.bf16.msra.mxu0 0
          %2475 = vmatprep.subr.bf16.mxu0 0
          %2476 = vmatpush1.bf16.msra.mxu0 0
          %2477 = vmatprep.subr.bf16.mxu0 0
          %2478 = vmatpush1.bf16.msra.mxu0 0
          %2479 = vmatprep.subr.bf16.mxu0 0
          %2480 = vmatpush1.bf16.msra.mxu0 0
          %2481 = vmatprep.mubr.bf16.mxu0 0
          %2482 = vmatmul.mubr.bf16.gmra.mrb[0].mxu0 %v2379
          %v2483 = vpop.f32.mrb[0].mxu0
          %v2484 = vadd.f32 %v2400, %v2483
          %v2485 = vpop.f32.mrb[0].mxu0
          %v2486 = vpop.f32.mrb[0].mxu0
          %v2487 = vpop.f32.mrb[0].mxu0
          %2488 = vdwg.mxu0
          %2489 = vst [vmem:[#allocation9] sm:$0x3] %v2484
        $region80: #{text_bert_forward.1} parent=59 // pred_fallthru
          _
        // Predicated region
        $region81: #{text_bert_forward.1} parent=59 // pred_check
          %p2490 = pneg %p276
        $region82: #{text_bert_forward.1} parent=59 // pred_check_branch
          %2492 = sbr.rel (%p2490) target = $region84
        $region83: #{text_bert_forward.1} parent=59 // pred_region
          %s2494 = ssub.s32 32, 32
          %2495 = vsyncadd [#allocation5], %s2494
          %s2497 = sshll.u32 [#allocation9], 4
          %s2498 = int_to_ptr.vmem [resolvable:$true] %s2497
          %2500 = dma.vmem_to_hbm [thread:$0]  %s2498, 32, %s10, [#allocation5]
        $region84: #{text_bert_forward.1} parent=59 // pred_fallthru
          _
        // Predicated region
        $region85: #{text_bert_forward.1} parent=59 // pred_check
          %p2501 = pneg %p276
        $region86: #{text_bert_forward.1} parent=59 // pred_check_branch
          %2503 = sbr.rel (%p2501) target = $region88
        $region87: #{text_bert_forward.1} parent=59 // pred_region
          %2504 = dma.done [#allocation5], 32
        $region88: #{text_bert_forward.1} parent=59 // pred_fallthru
          _
      $region60: #{text_bert_forward.1} parent=5 // pred_fallthru
        _
      %p2505 = scmp.le.s32.totalorder 2, %s23
      // Predicated region
      $region89: #{text_bert_forward.1} parent=5 // pred_check
        %p2506 = pneg %p2505
      $region90: #{text_bert_forward.1} parent=5 // pred_check_branch
        %2508 = sbr.rel (%p2506) target = $region92
      $region91: #{text_bert_forward.1} parent=5 // pred_region
        %s2509 = ssub.s32 %s23, 2
      $region92: #{text_bert_forward.1} parent=5 // pred_fallthru
        _
    $region6: #{text_bert_forward.1} parent=1 // loop_footer
      %s27 = sadd.s32 1, %s23
    $region7: #{text_bert_forward.1} parent=1 // loop_footer_branch
      %22 = sbr.rel target = $region3
    $region8: #{text_bert_forward.1} parent=1 // loop_exit
      _
    %2510 = vsyncpa [#allocation4], 1
    %s2511 = scalar_lea.sflag [#allocation4], 1
    %2512 = vsyncpa %s2511, 1
    %2513 = vsyncpa [#allocation7], 1
    %s2514 = scalar_lea.sflag [#allocation7], 1
    %2515 = vsyncpa %s2514, 1
    %2516 = vsyncpa [#allocation5], 1
    %s2517 = scalar_lea.sflag [#allocation5], 1
    %2518 = vsyncpa %s2517, 1

</llo_original>
